<compile_context>
chip_gen: v7x
topology: tpu7x:2x2x1
jax: 0.10.0
libtpu: 0.0.40
codegen_flags: <defaults>
</compile_context>

<pallas_src>
import numpy as np

import jax
import jax.numpy as jnp
from jax.experimental import pallas as pl
from jax.experimental.pallas import tpu as pltpu


def _freq_bands(n_freqs: int, logscale: bool = True):
    # Matches: 2 ** torch.linspace(0, N_freqs-1, N_freqs)      (logscale)
    #          torch.linspace(1, 2**(N_freqs-1), N_freqs)      (otherwise)
    if logscale:
        return [float(2.0 ** k) for k in range(n_freqs)]
    lo, hi = 1.0, float(2 ** (n_freqs - 1))
    if n_freqs == 1:
        return [lo]
    step = (hi - lo) / (n_freqs - 1)
    return [lo + step * k for k in range(n_freqs)]


def _pick_group(out_c: int, max_group: int = 32, min_lanes: int = 512) -> int:
    """Batch rows packed per kernel row so the lane dim is wide and vreg-dense."""
    if out_c >= min_lanes or max_group <= 1:
        return 1
    g_min = min(max_group, -(-min_lanes // out_c))
    best_g, best_u = g_min, -1.0
    for g in range(g_min, max_group + 1):
        w = g * out_c
        util = w / float(-(-w // 128) * 128)   # fraction of the last vregs used
        if util >= 0.93:
            return g
        if util > best_u:
            best_g, best_u = g, util
    return best_g


def _build_tables(in_channels: int, n_freqs: int, logscale: bool, group: int):
    """Block-diagonal (G*C, G*out_c) tile/scale matrix, phase row, identity mask."""
    C, G = in_channels, group
    out_c = C * (2 * n_freqs + 1)
    freqs = _freq_bands(n_freqs, logscale)

    emb1 = np.zeros((C, out_c), np.float32)
    phase1 = np.zeros((out_c,), np.float32)
    mask1 = np.zeros((out_c,), np.int32)
    for c in range(C):                      # identity block (value where-selected)
        emb1[c, c] = 1.0
        mask1[c] = 1
    for k in range(1, 2 * n_freqs + 1):
        f = freqs[(k - 1) // 2]
        is_cos = ((k - 1) % 2) == 1
        for c in range(C):
            emb1[c, k * C + c] = f
        if is_cos:
            phase1[k * C:(k + 1) * C] = np.pi / 2.0     # cos(z) = sin(z + pi/2)

    E = np.zeros((G * C, G * out_c), np.float32)
    for g in range(G):
        E[g * C:(g + 1) * C, g * out_c:(g + 1) * out_c] = emb1
    phase = np.tile(phase1, G)[None, :]
    mask = np.tile(mask1, G)[None, :]
    return E, phase, mask


def _embed_kernel(x_ref, emb_ref, phase_ref, mask_ref, o_ref):
    x = x_ref[...].astype(jnp.float32)                       # (tr, G*C)
    # Lane-dense tile+scale on the otherwise-idle MXU:
    #   xw[:, g*out_c + j] == freq(j) * x_row_g[j % C]
    # HIGHEST precision keeps this f32-exact (freqs are exact in bf16 triples).
    xw = jnp.dot(x, emb_ref[...],
                 preferred_element_type=jnp.float32,
                 precision=jax.lax.Precision.HIGHEST)        # (tr, G*out_c)
    y = jnp.sin(xw + phase_ref[...])                         # one wide sin
    out = jnp.where(mask_ref[...] != 0, xw, y)               # keep raw-x columns
    o_ref[...] = out.astype(o_ref.dtype)                     # single dense store


def high_dim_embedding(x, n_freqs: int, logscale: bool = True, *,
                       group: int | None = None, max_group: int = 32,
                       out_block_bytes: int = 4 * 1024 * 1024):
    """Pallas TPU implementation of HighDimEmbedding.forward (dim=-1).

    x: (B, in_channels) float array.
    returns: (B, in_channels * (2 * n_freqs + 1)) array of the same dtype.
    """
    B, C = x.shape
    out_c = C * (2 * n_freqs + 1)
    G = int(group) if group is not None else _pick_group(out_c, max_group)
    G = max(1, G)
    # TODO(synk): on v5e a smaller G (<=8 for C=3) keeps the HIGHEST-precision
    # block-diagonal matmul comfortably off its 197 TF/s MXU; pass group=8 there.

    # Pad batch to a multiple of G, then pack G rows per kernel row (free,
    # row-major reshape; no transpose).
    Bp = -(-B // G) * G
    xp = x if Bp == B else jnp.pad(x, ((0, Bp - B), (0, 0)))
    n_rows = Bp // G
    W_in, W_out = G * C, G * out_c
    x_packed = xp.reshape(n_rows, W_in)

    E, phase, mask = _build_tables(C, n_freqs, logscale, G)

    # Row-tile sizing: target ~out_block_bytes of output per grid step so the
    # ~0.35 us fixed per-step overhead is amortized; keep >=2 steps when there
    # is enough work so both v7x TensorCores get a share of the parallel axis.
    itemsize = jnp.dtype(x.dtype).itemsize
    bytes_per_row_out = W_out * itemsize
    tile_rows = max(1, int(out_block_bytes) // bytes_per_row_out)
    tile_rows = min(tile_rows, n_rows)
    if n_rows >= 16:
        half = -(-n_rows // 2)
        half = -(-half // 8) * 8
        tile_rows = min(tile_rows, half)
    if n_rows >= 8:
        tile_rows = max(8, (tile_rows // 8) * 8)     # sublane-aligned tiles
    else:
        tile_rows = n_rows                           # full-extent block
    grid = (pl.cdiv(n_rows, tile_rows),)             # tail tile is masked

    # Explicit VMEM budget: double-buffered in/out blocks + constants + slack,
    # capped at 48 MiB (safe on v7x's 64 MiB physical, raises v5e's 16 MiB).
    const_bytes = E.nbytes + phase.nbytes + mask.nbytes
    block_bytes = 2 * tile_rows * (W_in + W_out) * max(4, itemsize)
    vmem_limit = int(min(48 * 1024 * 1024,
                         max(16 * 1024 * 1024, 3 * block_bytes + 2 * const_bytes)))

    cost = pl.CostEstimate(
        flops=2 * n_rows * W_in * W_out + 3 * n_rows * W_out,
        transcendentals=n_rows * W_out,
        bytes_accessed=n_rows * (W_in + W_out) * itemsize + const_bytes,
    )

    out_packed = pl.pallas_call(
        _embed_kernel,
        out_shape=jax.ShapeDtypeStruct((n_rows, W_out), x.dtype),
        grid=grid,
        in_specs=[
            pl.BlockSpec((tile_rows, W_in), lambda i: (i, 0)),
            pl.BlockSpec((W_in, W_out), lambda i: (0, 0)),   # constant, fetched once
            pl.BlockSpec((1, W_out), lambda i: (0, 0)),
            pl.BlockSpec((1, W_out), lambda i: (0, 0)),
        ],
        out_specs=pl.BlockSpec((tile_rows, W_out), lambda i: (i, 0)),
        compiler_params=pltpu.CompilerParams(
            dimension_semantics=("parallel",),
            vmem_limit_bytes=vmem_limit,
        ),
        cost_estimate=cost,
    )(x_packed, jnp.asarray(E), jnp.asarray(phase), jnp.asarray(mask))

    out = out_packed.reshape(Bp, out_c)               # free row-major reshape
    return out if Bp == B else out[:B]


def _reference(x, n_freqs, logscale=True):
    freqs = _freq_bands(n_freqs, logscale)
    out = [x]
    for f in freqs:
        out.append(jnp.sin(f * x))
        out.append(jnp.cos(f * x))
    return jnp.concatenate(out, axis=-1)


if __name__ == "__main__":
    key = jax.random.PRNGKey(0)
    B, C, N_FREQS = 16, 3, 4  # xyz coordinates with 4 frequency bands
    x = jax.random.normal(key, (B, C), dtype=jnp.float32)

    out = jax.block_until_ready(high_dim_embedding(x, N_FREQS, logscale=True))
    ref = _reference(x, N_FREQS, logscale=True)
    assert out.shape == (B, C * (2 * N_FREQS + 1)), out.shape
    assert jnp.allclose(out, ref, atol=1e-4, rtol=1e-4), "mismatch vs reference"

    # Multi-tile path with masked tail tile, batch not divisible by the packing
    # group, and linear (non-log) frequency bands.
    B2 = 590
    x2 = 3.0 * jax.random.normal(jax.random.PRNGKey(1), (B2, C), dtype=jnp.float32)
    out2 = jax.block_until_ready(
        high_dim_embedding(x2, N_FREQS, logscale=False, out_block_bytes=1 << 12))
    ref2 = _reference(x2, N_FREQS, logscale=False)
    assert out2.shape == ref2.shape, out2.shape
    assert jnp.allclose(out2, ref2, atol=1e-4, rtol=1e-4), "tail/packing mismatch"

    print("KERNEL_OK")
</pallas_src>

<mosaic_0001>
module attributes {stable_mosaic.version = 11 : i64} {
  func.func @_embed_kernel(%arg0: i32, %arg1: memref<1x69xf32, #tpu.memory_space<vmem>>, %arg2: memref<69x621xf32, #tpu.memory_space<vmem>>, %arg3: memref<1x621xf32, #tpu.memory_space<vmem>>, %arg4: memref<1x621xi32, #tpu.memory_space<vmem>>, %arg5: memref<1x621xf32, #tpu.memory_space<vmem>>) attributes {dimension_semantics = [#tpu.dimension_semantics<parallel>], iteration_bounds = array<i64: 1>, scalar_prefetch = 0 : i64, scratch_operands = 0 : i64, tpu.core_type = #tpu.core_type<tc>, window_params = [{transform_indices = @transform_0, window_bounds = array<i64: 1, 69>}, {pipeline_mode = #tpu.pipeline_mode<synchronous>, transform_indices = @transform_1, window_bounds = array<i64: 69, 621>}, {pipeline_mode = #tpu.pipeline_mode<synchronous>, transform_indices = @transform_2, window_bounds = array<i64: 1, 621>}, {pipeline_mode = #tpu.pipeline_mode<synchronous>, transform_indices = @transform_3, window_bounds = array<i64: 1, 621>}, {transform_indices = @transform_4, window_bounds = array<i64: 1, 621>}]} {
    %c0 = arith.constant 0 : index
    %c0_0 = arith.constant 0 : index
    %0 = vector.load %arg1[%c0, %c0_0] : memref<1x69xf32, #tpu.memory_space<vmem>>, vector<1x69xf32>
    %c0_1 = arith.constant 0 : index
    %c0_2 = arith.constant 0 : index
    %1 = vector.load %arg2[%c0_1, %c0_2] : memref<69x621xf32, #tpu.memory_space<vmem>>, vector<69x621xf32>
    %cst = arith.constant dense<0.000000e+00> : vector<1x621xf32>
    %2 = tpu.matmul %0, %1, %cst {dimension_numbers = #tpu.dot_dimension_numbers<[1], [0], [0], [1], [0, 0, 1, 1], [], []>, precision = #tpu.contract_precision<fp32>} : vector<1x69xf32>, vector<69x621xf32>, vector<1x621xf32> -> vector<1x621xf32>
    %c0_3 = arith.constant 0 : index
    %c0_4 = arith.constant 0 : index
    %3 = vector.load %arg3[%c0_3, %c0_4] : memref<1x621xf32, #tpu.memory_space<vmem>>, vector<1x621xf32>
    %4 = arith.addf %2, %3 : vector<1x621xf32>
    %5 = math.sin %4 : vector<1x621xf32>
    %c0_5 = arith.constant 0 : index
    %c0_6 = arith.constant 0 : index
    %6 = vector.load %arg4[%c0_5, %c0_6] : memref<1x621xi32, #tpu.memory_space<vmem>>, vector<1x621xi32>
    %c0_i32 = arith.constant 0 : i32
    %7 = vector.broadcast %c0_i32 : i32 to vector<1x621xi32>
    %8 = arith.cmpi ne, %6, %7 : vector<1x621xi32>
    %9 = arith.select %8, %2, %5 : vector<1x621xi1>, vector<1x621xf32>
    %c0_7 = arith.constant 0 : index
    %c0_8 = arith.constant 0 : index
    %10 = vector.load %arg5[%c0_7, %c0_8] : memref<1x621xf32, #tpu.memory_space<vmem>>, vector<1x621xf32>
    tpu.vector_store %arg5[%c0_7, %c0_8], %9 {strides = array<i32>} : memref<1x621xf32, #tpu.memory_space<vmem>>, vector<1x621xf32>,
    return
  }
  func.func @transform_0(%arg0: i32) -> (i32, i32) {
    %c0_i32 = arith.constant 0 : i32
    %c0_i32_0 = arith.constant 0 : i32
    return %arg0, %c0_i32 : i32, i32
  }
  func.func @transform_1(%arg0: i32) -> (i32, i32) {
    %c0_i32 = arith.constant 0 : i32
    %c0_i32_0 = arith.constant 0 : i32
    %c0_i32_1 = arith.constant 0 : i32
    return %c0_i32, %c0_i32_0 : i32, i32
  }
  func.func @transform_2(%arg0: i32) -> (i32, i32) {
    %c0_i32 = arith.constant 0 : i32
    %c0_i32_0 = arith.constant 0 : i32
    %c0_i32_1 = arith.constant 0 : i32
    return %c0_i32, %c0_i32_0 : i32, i32
  }
  func.func @transform_3(%arg0: i32) -> (i32, i32) {
    %c0_i32 = arith.constant 0 : i32
    %c0_i32_0 = arith.constant 0 : i32
    %c0_i32_1 = arith.constant 0 : i32
    return %c0_i32, %c0_i32_0 : i32, i32
  }
  func.func @transform_4(%arg0: i32) -> (i32, i32) {
    %c0_i32 = arith.constant 0 : i32
    %c0_i32_0 = arith.constant 0 : i32
    return %arg0, %c0_i32 : i32, i32
  }
}

</mosaic_0001>

<llo_original>
// kernel: tpu_custom_call.1
$region0: #{tpu_custom_call.1}
  #allocation0 [shape = 'u32[]', space=smem, size = 0x4, offset = 0x4, fixed_abs, tag = 'smem constant byte address 0x4 - core index']
  #allocation1 [shape = 'u32[144,128]{1,0:T(1,128)}', space=vmem, size = 0x12000, scoped, tag = 'internal scratch']
  %s0 = inlined_call_operand.hbm [shape: f32[1,69], index: 0, kind: input, shape index: {}]
  %s1 = inlined_call_operand.hbm [shape: f32[69,621], index: 1, kind: input, shape index: {}]
  %s2 = inlined_call_operand.vmem [shape: f32[1,621], index: 2, kind: input, shape index: {}]
  %s3 = inlined_call_operand.vmem [shape: s32[1,621], index: 3, kind: input, shape index: {}]
  %s4 = inlined_call_operand.hbm [shape: f32[1,621], index: 4, kind: output, shape index: {}]
  %s5 = sld [smem:[#allocation0]]
  $region34: #{tpu_custom_call.1} parent=0
    _
  %s7 = ssub.s32 1, %s5
  %s8 = scalar_select 0, %s7, %s5
  $region1: #{tpu_custom_call.1} parent=0
    #allocation2 [shape = 'u8[512]{0}', space=vmem, size = 0x400, scoped, tag = 'input window, operand 0, single buffered']
    #allocation3 [shape = 's32[1]{0}', space=sflag, size = 0x4, scoped, tag = 'scoped memory for tpu_custom_call.1']
    #allocation4 [shape = 's32[1]{0}', space=sflag, size = 0x4, scoped, tag = 'scoped memory for tpu_custom_call.1']
    #allocation5 [shape = 'u8[184320]{0}', space=vmem, size = 0x2d000, scoped, tag = 'input window, operand 1, single buffered']
    #allocation6 [shape = 's32[1]{0}', space=sflag, size = 0x4, scoped, tag = 'scoped memory for tpu_custom_call.1']
    #allocation7 [shape = 'u8[2560]{0}', space=vmem, size = 0xc00, scoped, tag = 'output window, operand 0, single buffered']
    %9 = vsyncpa [#allocation3], 0
    %10 = vsyncpa [#allocation6], 0
    %11 = vsyncpa [#allocation4], 0
    // Predicated region
    $region2: #{tpu_custom_call.1} parent=1 // pred_check
      _
    $region3: #{tpu_custom_call.1} parent=1 // pred_check_branch
      %13 = sbr.rel (0) target = $region5
    $region4: #{tpu_custom_call.1} parent=1 // pred_region
      %s15 = ssub.s32 16, 16
      %16 = vsyncadd [#allocation3], %s15
      %s18 = sshll.u32 [#allocation2], 4
      %s19 = int_to_ptr.vmem [resolvable:$true] %s18
      %21 = dma.hbm_to_vmem [thread:$0]  %s0, 16, %s19, [#allocation3]
    $region5: #{tpu_custom_call.1} parent=1 // pred_fallthru
      _
    // Predicated region
    $region6: #{tpu_custom_call.1} parent=1 // pred_check
      _
    $region7: #{tpu_custom_call.1} parent=1 // pred_check_branch
      %23 = sbr.rel (0) target = $region9
    $region8: #{tpu_custom_call.1} parent=1 // pred_region
      %s25 = ssub.s32 5760, 5760
      %26 = vsyncadd [#allocation6], %s25
      %s27 = sshll.u32 [#allocation5], 4
      %s28 = int_to_ptr.vmem [resolvable:$true] %s27
      %33 = dma.hbm_to_vmem [thread:$0]  %s1, 5760, %s28, [#allocation6], 640, 640, 40
    $region9: #{tpu_custom_call.1} parent=1 // pred_fallthru
      _
    // Predicated region
    $region10: #{tpu_custom_call.1} parent=1 // pred_check
      _
    $region11: #{tpu_custom_call.1} parent=1 // pred_check_branch
      %35 = sbr.rel (0) target = $region13
    $region12: #{tpu_custom_call.1} parent=1 // pred_region
      _
    $region13: #{tpu_custom_call.1} parent=1 // pred_fallthru
      _
    // Predicated region
    $region14: #{tpu_custom_call.1} parent=1 // pred_check
      _
    $region15: #{tpu_custom_call.1} parent=1 // pred_check_branch
      %37 = sbr.rel (0) target = $region17
    $region16: #{tpu_custom_call.1} parent=1 // pred_region
      _
    $region17: #{tpu_custom_call.1} parent=1 // pred_fallthru
      _
    // Predicated region
    $region18: #{tpu_custom_call.1} parent=1 // pred_check
      _
    $region19: #{tpu_custom_call.1} parent=1 // pred_check_branch
      %39 = sbr.rel (0) target = $region21
    $region20: #{tpu_custom_call.1} parent=1 // pred_region
      %40 = dma.done [#allocation3], 16
    $region21: #{tpu_custom_call.1} parent=1 // pred_fallthru
      _
    // Predicated region
    $region22: #{tpu_custom_call.1} parent=1 // pred_check
      _
    $region23: #{tpu_custom_call.1} parent=1 // pred_check_branch
      %42 = sbr.rel (0) target = $region25
    $region24: #{tpu_custom_call.1} parent=1 // pred_region
      %43 = dma.done [#allocation6], 5760
    $region25: #{tpu_custom_call.1} parent=1 // pred_fallthru
      _
    %v44 = vld [vmem:[#allocation2] sm:$0x1]
    %v45 = vld [vmem:[#allocation5] sm:$0xff]
    %v46 = vld [vmem:[#allocation5 + $0x8] sm:$0xff]
    %v47 = vld [vmem:[#allocation5 + $0x10] sm:$0xff]
    %v48 = vld [vmem:[#allocation5 + $0x18] sm:$0xff]
    %v49 = vld [vmem:[#allocation5 + $0x20] sm:$0xff]
    %v50 = vld [vmem:[#allocation5 + $0x28] sm:$0xff]
    %v51 = vld [vmem:[#allocation5 + $0x30] sm:$0xff]
    %v52 = vld [vmem:[#allocation5 + $0x38] sm:$0xff]
    %v53 = vld [vmem:[#allocation5 + $0x40] sm:$0xff]
    %v54 = vld [vmem:[#allocation5 + $0x48] sm:$0xff]
    %v55 = vld [vmem:[#allocation5 + $0x50] sm:$0xff]
    %v56 = vld [vmem:[#allocation5 + $0x58] sm:$0xff]
    %v57 = vld [vmem:[#allocation5 + $0x60] sm:$0xff]
    %v58 = vld [vmem:[#allocation5 + $0x68] sm:$0xff]
    %v59 = vld [vmem:[#allocation5 + $0x70] sm:$0xff]
    %v60 = vld [vmem:[#allocation5 + $0x78] sm:$0xff]
    %v61 = vld [vmem:[#allocation5 + $0x80] sm:$0xff]
    %v62 = vld [vmem:[#allocation5 + $0x88] sm:$0xff]
    %v63 = vld [vmem:[#allocation5 + $0x90] sm:$0xff]
    %v64 = vld [vmem:[#allocation5 + $0x98] sm:$0xff]
    %v65 = vld [vmem:[#allocation5 + $0xa0] sm:$0xff]
    %v66 = vld [vmem:[#allocation5 + $0xa8] sm:$0xff]
    %v67 = vld [vmem:[#allocation5 + $0xb0] sm:$0xff]
    %v68 = vld [vmem:[#allocation5 + $0xb8] sm:$0xff]
    %v69 = vld [vmem:[#allocation5 + $0xc0] sm:$0xff]
    %v70 = vld [vmem:[#allocation5 + $0xc8] sm:$0xff]
    %v71 = vld [vmem:[#allocation5 + $0xd0] sm:$0xff]
    %v72 = vld [vmem:[#allocation5 + $0xd8] sm:$0xff]
    %v73 = vld [vmem:[#allocation5 + $0xe0] sm:$0xff]
    %v74 = vld [vmem:[#allocation5 + $0xe8] sm:$0xff]
    %v75 = vld [vmem:[#allocation5 + $0xf0] sm:$0xff]
    %v76 = vld [vmem:[#allocation5 + $0xf8] sm:$0xff]
    %v77 = vld [vmem:[#allocation5 + $0x100] sm:$0xff]
    %v78 = vld [vmem:[#allocation5 + $0x108] sm:$0xff]
    %v79 = vld [vmem:[#allocation5 + $0x110] sm:$0xff]
    %v80 = vld [vmem:[#allocation5 + $0x118] sm:$0xff]
    %v81 = vld [vmem:[#allocation5 + $0x120] sm:$0xff]
    %v82 = vld [vmem:[#allocation5 + $0x128] sm:$0xff]
    %v83 = vld [vmem:[#allocation5 + $0x130] sm:$0xff]
    %v84 = vld [vmem:[#allocation5 + $0x138] sm:$0xff]
    %v85 = vld [vmem:[#allocation5 + $0x140] sm:$0x1f]
    %v86 = vld [vmem:[#allocation5 + $0x148] sm:$0x1f]
    %v87 = vld [vmem:[#allocation5 + $0x150] sm:$0x1f]
    %v88 = vld [vmem:[#allocation5 + $0x158] sm:$0x1f]
    %v89 = vld [vmem:[#allocation5 + $0x160] sm:$0x1f]
    %vm90 = vcmask 564224
    %v92 = vsel %vm90, %v44, 0
    %vm94 = vcmask 1044480
    %v96 = vsel %vm94, %v85, 0
    %v99 = vsel %vm94, %v86, 0
    %v102 = vsel %vm94, %v87, 0
    %v105 = vsel %vm94, %v88, 0
    %v108 = vsel %vm94, %v89, 0
    %v110 = vand.u32 %v46, 4294901760
    %111 = vmatprep.subr.mxu0 %v110
    %v112 = vand.u32 %v45, 4294901760
    %113 = vmatpush1.msra.mxu0 %v112
    %v114 = vand.u32 %v51, 4294901760
    %115 = vmatprep.subr.mxu0 %v114
    %v116 = vand.u32 %v50, 4294901760
    %117 = vmatpush1.msra.mxu0 %v116
    %v118 = vand.u32 %v56, 4294901760
    %119 = vmatprep.subr.mxu0 %v118
    %v120 = vand.u32 %v55, 4294901760
    %121 = vmatpush1.msra.mxu0 %v120
    %v122 = vand.u32 %v61, 4294901760
    %123 = vmatprep.subr.mxu0 %v122
    %v124 = vand.u32 %v60, 4294901760
    %125 = vmatpush1.msra.mxu0 %v124
    %v126 = vand.u32 %v66, 4294901760
    %127 = vmatprep.subr.mxu0 %v126
    %v128 = vand.u32 %v65, 4294901760
    %129 = vmatpush1.msra.mxu0 %v128
    %v130 = vand.u32 %v71, 4294901760
    %131 = vmatprep.subr.mxu0 %v130
    %v132 = vand.u32 %v70, 4294901760
    %133 = vmatpush1.msra.mxu0 %v132
    %v134 = vand.u32 %v76, 4294901760
    %135 = vmatprep.subr.mxu0 %v134
    %v136 = vand.u32 %v75, 4294901760
    %137 = vmatpush1.msra.mxu0 %v136
    %v138 = vand.u32 %v81, 4294901760
    %139 = vmatprep.subr.mxu0 %v138
    %v140 = vand.u32 %v80, 4294901760
    %141 = vmatpush1.msra.mxu0 %v140
    %v142 = vand.u32 %v99, 4294901760
    %143 = vmatprep.subr.mxu0 %v142
    %v144 = vand.u32 %v96, 4294901760
    %145 = vmatpush1.msra.mxu0 %v144
    %146 = vmatprep.subr.mxu0 0.0
    %147 = vmatpush1.msra.mxu0 0.0
    %148 = vmatprep.subr.mxu0 0.0
    %149 = vmatpush1.msra.mxu0 0.0
    %150 = vmatprep.subr.mxu0 0.0
    %151 = vmatpush1.msra.mxu0 0.0
    %152 = vmatprep.subr.mxu0 0.0
    %153 = vmatpush1.msra.mxu0 0.0
    %154 = vmatprep.subr.mxu0 0.0
    %155 = vmatpush1.msra.mxu0 0.0
    %156 = vmatprep.subr.mxu0 0.0
    %157 = vmatpush1.msra.mxu0 0.0
    %158 = vmatprep.subr.mxu0 0.0
    %159 = vmatpush1.msra.mxu0 0.0
    %160 = vmatprep.subr.mxu0 0.0
    %161 = vmatpush1.msra.mxu0 0.0
    %162 = vmatprep.subr.mxu0 0.0
    %163 = vmatpush1.msra.mxu0 0.0
    %164 = vmatprep.subr.mxu0 0.0
    %165 = vmatpush1.msra.mxu0 0.0
    %166 = vmatprep.subr.mxu0 0.0
    %167 = vmatpush1.msra.mxu0 0.0
    %168 = vmatprep.subr.mxu0 0.0
    %169 = vmatpush1.msra.mxu0 0.0
    %170 = vmatprep.subr.mxu0 0.0
    %171 = vmatpush1.msra.mxu0 0.0
    %172 = vmatprep.subr.mxu0 0.0
    %173 = vmatpush1.msra.mxu0 0.0
    %174 = vmatprep.subr.mxu0 0.0
    %175 = vmatpush1.msra.mxu0 0.0
    %176 = vmatprep.subr.mxu0 0.0
    %177 = vmatpush1.msra.mxu0 0.0
    %178 = vmatprep.subr.mxu0 0.0
    %179 = vmatpush1.msra.mxu0 0.0
    %180 = vmatprep.subr.mxu0 0.0
    %181 = vmatpush1.msra.mxu0 0.0
    %182 = vmatprep.subr.mxu0 0.0
    %183 = vmatpush1.msra.mxu0 0.0
    %184 = vmatprep.subr.mxu0 0.0
    %185 = vmatpush1.msra.mxu0 0.0
    %186 = vmatprep.subr.mxu0 0.0
    %187 = vmatpush1.msra.mxu0 0.0
    %188 = vmatprep.subr.mxu0 0.0
    %189 = vmatpush1.msra.mxu0 0.0
    %190 = vmatprep.subr.mxu0 0.0
    %191 = vmatpush1.msra.mxu0 0.0
    %192 = vmatprep.mubr.f32.mxu0 0.0
    %v193 = vand.u32 %v92, 4294901760
    %v194 = vsub.f32 %v92, %v193
    %v195 = vand.u32 %v194, 4294901760
    %v196 = vsub.f32 %v194, %v195
    %v197 = vand.u32 %v196, 4294901760
    %198 = vmatmul.mubr.f32.gmra.mrb[0].mxu0 %v197
    %v199 = vpop.f32.mrb[0].mxu0
    %v200 = vadd.f32 0.0, %v199
    %v201 = vpop.f32.mrb[0].mxu0
    %v202 = vadd.f32 0.0, %v201
    %203 = vdwg.mxu0
    %v204 = vand.u32 %v46, 4294901760
    %v205 = vsub.f32 %v46, %v204
    %v206 = vand.u32 %v205, 4294901760
    %v207 = vsub.f32 %v205, %v206
    %v208 = vand.u32 %v207, 4294901760
    %209 = vmatprep.subr.mxu0 %v208
    %v210 = vand.u32 %v45, 4294901760
    %v211 = vsub.f32 %v45, %v210
    %v212 = vand.u32 %v211, 4294901760
    %v213 = vsub.f32 %v211, %v212
    %v214 = vand.u32 %v213, 4294901760
    %215 = vmatpush1.msra.mxu0 %v214
    %v216 = vand.u32 %v51, 4294901760
    %v217 = vsub.f32 %v51, %v216
    %v218 = vand.u32 %v217, 4294901760
    %v219 = vsub.f32 %v217, %v218
    %v220 = vand.u32 %v219, 4294901760
    %221 = vmatprep.subr.mxu0 %v220
    %v222 = vand.u32 %v50, 4294901760
    %v223 = vsub.f32 %v50, %v222
    %v224 = vand.u32 %v223, 4294901760
    %v225 = vsub.f32 %v223, %v224
    %v226 = vand.u32 %v225, 4294901760
    %227 = vmatpush1.msra.mxu0 %v226
    %v228 = vand.u32 %v56, 4294901760
    %v229 = vsub.f32 %v56, %v228
    %v230 = vand.u32 %v229, 4294901760
    %v231 = vsub.f32 %v229, %v230
    %v232 = vand.u32 %v231, 4294901760
    %233 = vmatprep.subr.mxu0 %v232
    %v234 = vand.u32 %v55, 4294901760
    %v235 = vsub.f32 %v55, %v234
    %v236 = vand.u32 %v235, 4294901760
    %v237 = vsub.f32 %v235, %v236
    %v238 = vand.u32 %v237, 4294901760
    %239 = vmatpush1.msra.mxu0 %v238
    %v240 = vand.u32 %v61, 4294901760
    %v241 = vsub.f32 %v61, %v240
    %v242 = vand.u32 %v241, 4294901760
    %v243 = vsub.f32 %v241, %v242
    %v244 = vand.u32 %v243, 4294901760
    %245 = vmatprep.subr.mxu0 %v244
    %v246 = vand.u32 %v60, 4294901760
    %v247 = vsub.f32 %v60, %v246
    %v248 = vand.u32 %v247, 4294901760
    %v249 = vsub.f32 %v247, %v248
    %v250 = vand.u32 %v249, 4294901760
    %251 = vmatpush1.msra.mxu0 %v250
    %v252 = vand.u32 %v66, 4294901760
    %v253 = vsub.f32 %v66, %v252
    %v254 = vand.u32 %v253, 4294901760
    %v255 = vsub.f32 %v253, %v254
    %v256 = vand.u32 %v255, 4294901760
    %257 = vmatprep.subr.mxu0 %v256
    %v258 = vand.u32 %v65, 4294901760
    %v259 = vsub.f32 %v65, %v258
    %v260 = vand.u32 %v259, 4294901760
    %v261 = vsub.f32 %v259, %v260
    %v262 = vand.u32 %v261, 4294901760
    %263 = vmatpush1.msra.mxu0 %v262
    %v264 = vand.u32 %v71, 4294901760
    %v265 = vsub.f32 %v71, %v264
    %v266 = vand.u32 %v265, 4294901760
    %v267 = vsub.f32 %v265, %v266
    %v268 = vand.u32 %v267, 4294901760
    %269 = vmatprep.subr.mxu0 %v268
    %v270 = vand.u32 %v70, 4294901760
    %v271 = vsub.f32 %v70, %v270
    %v272 = vand.u32 %v271, 4294901760
    %v273 = vsub.f32 %v271, %v272
    %v274 = vand.u32 %v273, 4294901760
    %275 = vmatpush1.msra.mxu0 %v274
    %v276 = vand.u32 %v76, 4294901760
    %v277 = vsub.f32 %v76, %v276
    %v278 = vand.u32 %v277, 4294901760
    %v279 = vsub.f32 %v277, %v278
    %v280 = vand.u32 %v279, 4294901760
    %281 = vmatprep.subr.mxu0 %v280
    %v282 = vand.u32 %v75, 4294901760
    %v283 = vsub.f32 %v75, %v282
    %v284 = vand.u32 %v283, 4294901760
    %v285 = vsub.f32 %v283, %v284
    %v286 = vand.u32 %v285, 4294901760
    %287 = vmatpush1.msra.mxu0 %v286
    %v288 = vand.u32 %v81, 4294901760
    %v289 = vsub.f32 %v81, %v288
    %v290 = vand.u32 %v289, 4294901760
    %v291 = vsub.f32 %v289, %v290
    %v292 = vand.u32 %v291, 4294901760
    %293 = vmatprep.subr.mxu0 %v292
    %v294 = vand.u32 %v80, 4294901760
    %v295 = vsub.f32 %v80, %v294
    %v296 = vand.u32 %v295, 4294901760
    %v297 = vsub.f32 %v295, %v296
    %v298 = vand.u32 %v297, 4294901760
    %299 = vmatpush1.msra.mxu0 %v298
    %v300 = vand.u32 %v99, 4294901760
    %v301 = vsub.f32 %v99, %v300
    %v302 = vand.u32 %v301, 4294901760
    %v303 = vsub.f32 %v301, %v302
    %v304 = vand.u32 %v303, 4294901760
    %305 = vmatprep.subr.mxu0 %v304
    %v306 = vand.u32 %v96, 4294901760
    %v307 = vsub.f32 %v96, %v306
    %v308 = vand.u32 %v307, 4294901760
    %v309 = vsub.f32 %v307, %v308
    %v310 = vand.u32 %v309, 4294901760
    %311 = vmatpush1.msra.mxu0 %v310
    %312 = vmatprep.subr.mxu0 0.0
    %313 = vmatpush1.msra.mxu0 0.0
    %314 = vmatprep.subr.mxu0 0.0
    %315 = vmatpush1.msra.mxu0 0.0
    %316 = vmatprep.subr.mxu0 0.0
    %317 = vmatpush1.msra.mxu0 0.0
    %318 = vmatprep.subr.mxu0 0.0
    %319 = vmatpush1.msra.mxu0 0.0
    %320 = vmatprep.subr.mxu0 0.0
    %321 = vmatpush1.msra.mxu0 0.0
    %322 = vmatprep.subr.mxu0 0.0
    %323 = vmatpush1.msra.mxu0 0.0
    %324 = vmatprep.subr.mxu0 0.0
    %325 = vmatpush1.msra.mxu0 0.0
    %326 = vmatprep.subr.mxu0 0.0
    %327 = vmatpush1.msra.mxu0 0.0
    %328 = vmatprep.subr.mxu0 0.0
    %329 = vmatpush1.msra.mxu0 0.0
    %330 = vmatprep.subr.mxu0 0.0
    %331 = vmatpush1.msra.mxu0 0.0
    %332 = vmatprep.subr.mxu0 0.0
    %333 = vmatpush1.msra.mxu0 0.0
    %334 = vmatprep.subr.mxu0 0.0
    %335 = vmatpush1.msra.mxu0 0.0
    %336 = vmatprep.subr.mxu0 0.0
    %337 = vmatpush1.msra.mxu0 0.0
    %338 = vmatprep.subr.mxu0 0.0
    %339 = vmatpush1.msra.mxu0 0.0
    %340 = vmatprep.subr.mxu0 0.0
    %341 = vmatpush1.msra.mxu0 0.0
    %342 = vmatprep.subr.mxu0 0.0
    %343 = vmatpush1.msra.mxu0 0.0
    %344 = vmatprep.subr.mxu0 0.0
    %345 = vmatpush1.msra.mxu0 0.0
    %346 = vmatprep.subr.mxu0 0.0
    %347 = vmatpush1.msra.mxu0 0.0
    %348 = vmatprep.subr.mxu0 0.0
    %349 = vmatpush1.msra.mxu0 0.0
    %350 = vmatprep.subr.mxu0 0.0
    %351 = vmatpush1.msra.mxu0 0.0
    %352 = vmatprep.subr.mxu0 0.0
    %353 = vmatpush1.msra.mxu0 0.0
    %354 = vmatprep.subr.mxu0 0.0
    %355 = vmatpush1.msra.mxu0 0.0
    %356 = vmatprep.subr.mxu0 0.0
    %357 = vmatpush1.msra.mxu0 0.0
    %358 = vmatprep.mubr.f32.mxu0 0.0
    %v359 = vand.u32 %v92, 4294901760
    %360 = vmatmul.mubr.f32.gmra.mrb[0].mxu0 %v359
    %v361 = vpop.f32.mrb[0].mxu0
    %v362 = vadd.f32 %v200, %v361
    %v363 = vpop.f32.mrb[0].mxu0
    %v364 = vadd.f32 %v202, %v363
    %365 = vdwg.mxu0
    %v366 = vand.u32 %v46, 4294901760
    %v367 = vsub.f32 %v46, %v366
    %368 = vmatprep.subr.mxu0 %v367
    %v369 = vand.u32 %v45, 4294901760
    %v370 = vsub.f32 %v45, %v369
    %371 = vmatpush1.msra.mxu0 %v370
    %v372 = vand.u32 %v51, 4294901760
    %v373 = vsub.f32 %v51, %v372
    %374 = vmatprep.subr.mxu0 %v373
    %v375 = vand.u32 %v50, 4294901760
    %v376 = vsub.f32 %v50, %v375
    %377 = vmatpush1.msra.mxu0 %v376
    %v378 = vand.u32 %v56, 4294901760
    %v379 = vsub.f32 %v56, %v378
    %380 = vmatprep.subr.mxu0 %v379
    %v381 = vand.u32 %v55, 4294901760
    %v382 = vsub.f32 %v55, %v381
    %383 = vmatpush1.msra.mxu0 %v382
    %v384 = vand.u32 %v61, 4294901760
    %v385 = vsub.f32 %v61, %v384
    %386 = vmatprep.subr.mxu0 %v385
    %v387 = vand.u32 %v60, 4294901760
    %v388 = vsub.f32 %v60, %v387
    %389 = vmatpush1.msra.mxu0 %v388
    %v390 = vand.u32 %v66, 4294901760
    %v391 = vsub.f32 %v66, %v390
    %392 = vmatprep.subr.mxu0 %v391
    %v393 = vand.u32 %v65, 4294901760
    %v394 = vsub.f32 %v65, %v393
    %395 = vmatpush1.msra.mxu0 %v394
    %v396 = vand.u32 %v71, 4294901760
    %v397 = vsub.f32 %v71, %v396
    %398 = vmatprep.subr.mxu0 %v397
    %v399 = vand.u32 %v70, 4294901760
    %v400 = vsub.f32 %v70, %v399
    %401 = vmatpush1.msra.mxu0 %v400
    %v402 = vand.u32 %v76, 4294901760
    %v403 = vsub.f32 %v76, %v402
    %404 = vmatprep.subr.mxu0 %v403
    %v405 = vand.u32 %v75, 4294901760
    %v406 = vsub.f32 %v75, %v405
    %407 = vmatpush1.msra.mxu0 %v406
    %v408 = vand.u32 %v81, 4294901760
    %v409 = vsub.f32 %v81, %v408
    %410 = vmatprep.subr.mxu0 %v409
    %v411 = vand.u32 %v80, 4294901760
    %v412 = vsub.f32 %v80, %v411
    %413 = vmatpush1.msra.mxu0 %v412
    %v414 = vand.u32 %v99, 4294901760
    %v415 = vsub.f32 %v99, %v414
    %416 = vmatprep.subr.mxu0 %v415
    %v417 = vand.u32 %v96, 4294901760
    %v418 = vsub.f32 %v96, %v417
    %419 = vmatpush1.msra.mxu0 %v418
    %420 = vmatprep.subr.mxu0 0.0
    %421 = vmatpush1.msra.mxu0 0.0
    %422 = vmatprep.subr.mxu0 0.0
    %423 = vmatpush1.msra.mxu0 0.0
    %424 = vmatprep.subr.mxu0 0.0
    %425 = vmatpush1.msra.mxu0 0.0
    %426 = vmatprep.subr.mxu0 0.0
    %427 = vmatpush1.msra.mxu0 0.0
    %428 = vmatprep.subr.mxu0 0.0
    %429 = vmatpush1.msra.mxu0 0.0
    %430 = vmatprep.subr.mxu0 0.0
    %431 = vmatpush1.msra.mxu0 0.0
    %432 = vmatprep.subr.mxu0 0.0
    %433 = vmatpush1.msra.mxu0 0.0
    %434 = vmatprep.subr.mxu0 0.0
    %435 = vmatpush1.msra.mxu0 0.0
    %436 = vmatprep.subr.mxu0 0.0
    %437 = vmatpush1.msra.mxu0 0.0
    %438 = vmatprep.subr.mxu0 0.0
    %439 = vmatpush1.msra.mxu0 0.0
    %440 = vmatprep.subr.mxu0 0.0
    %441 = vmatpush1.msra.mxu0 0.0
    %442 = vmatprep.subr.mxu0 0.0
    %443 = vmatpush1.msra.mxu0 0.0
    %444 = vmatprep.subr.mxu0 0.0
    %445 = vmatpush1.msra.mxu0 0.0
    %446 = vmatprep.subr.mxu0 0.0
    %447 = vmatpush1.msra.mxu0 0.0
    %448 = vmatprep.subr.mxu0 0.0
    %449 = vmatpush1.msra.mxu0 0.0
    %450 = vmatprep.subr.mxu0 0.0
    %451 = vmatpush1.msra.mxu0 0.0
    %452 = vmatprep.subr.mxu0 0.0
    %453 = vmatpush1.msra.mxu0 0.0
    %454 = vmatprep.subr.mxu0 0.0
    %455 = vmatpush1.msra.mxu0 0.0
    %456 = vmatprep.subr.mxu0 0.0
    %457 = vmatpush1.msra.mxu0 0.0
    %458 = vmatprep.subr.mxu0 0.0
    %459 = vmatpush1.msra.mxu0 0.0
    %460 = vmatprep.subr.mxu0 0.0
    %461 = vmatpush1.msra.mxu0 0.0
    %462 = vmatprep.subr.mxu0 0.0
    %463 = vmatpush1.msra.mxu0 0.0
    %464 = vmatprep.subr.mxu0 0.0
    %465 = vmatpush1.msra.mxu0 0.0
    %466 = vmatprep.mubr.f32.mxu0 0.0
    %v467 = vand.u32 %v92, 4294901760
    %v468 = vsub.f32 %v92, %v467
    %469 = vmatmul.mubr.f32.gmra.mrb[0].mxu0 %v468
    %v470 = vpop.f32.mrb[0].mxu0
    %v471 = vadd.f32 %v362, %v470
    %v472 = vpop.f32.mrb[0].mxu0
    %v473 = vadd.f32 %v364, %v472
    %474 = vdwg.mxu0
    %v475 = vand.u32 %v46, 4294901760
    %476 = vmatprep.subr.mxu0 %v475
    %v477 = vand.u32 %v45, 4294901760
    %478 = vmatpush1.msra.mxu0 %v477
    %v479 = vand.u32 %v51, 4294901760
    %480 = vmatprep.subr.mxu0 %v479
    %v481 = vand.u32 %v50, 4294901760
    %482 = vmatpush1.msra.mxu0 %v481
    %v483 = vand.u32 %v56, 4294901760
    %484 = vmatprep.subr.mxu0 %v483
    %v485 = vand.u32 %v55, 4294901760
    %486 = vmatpush1.msra.mxu0 %v485
    %v487 = vand.u32 %v61, 4294901760
    %488 = vmatprep.subr.mxu0 %v487
    %v489 = vand.u32 %v60, 4294901760
    %490 = vmatpush1.msra.mxu0 %v489
    %v491 = vand.u32 %v66, 4294901760
    %492 = vmatprep.subr.mxu0 %v491
    %v493 = vand.u32 %v65, 4294901760
    %494 = vmatpush1.msra.mxu0 %v493
    %v495 = vand.u32 %v71, 4294901760
    %496 = vmatprep.subr.mxu0 %v495
    %v497 = vand.u32 %v70, 4294901760
    %498 = vmatpush1.msra.mxu0 %v497
    %v499 = vand.u32 %v76, 4294901760
    %500 = vmatprep.subr.mxu0 %v499
    %v501 = vand.u32 %v75, 4294901760
    %502 = vmatpush1.msra.mxu0 %v501
    %v503 = vand.u32 %v81, 4294901760
    %504 = vmatprep.subr.mxu0 %v503
    %v505 = vand.u32 %v80, 4294901760
    %506 = vmatpush1.msra.mxu0 %v505
    %v507 = vand.u32 %v99, 4294901760
    %508 = vmatprep.subr.mxu0 %v507
    %v509 = vand.u32 %v96, 4294901760
    %510 = vmatpush1.msra.mxu0 %v509
    %511 = vmatprep.subr.mxu0 0.0
    %512 = vmatpush1.msra.mxu0 0.0
    %513 = vmatprep.subr.mxu0 0.0
    %514 = vmatpush1.msra.mxu0 0.0
    %515 = vmatprep.subr.mxu0 0.0
    %516 = vmatpush1.msra.mxu0 0.0
    %517 = vmatprep.subr.mxu0 0.0
    %518 = vmatpush1.msra.mxu0 0.0
    %519 = vmatprep.subr.mxu0 0.0
    %520 = vmatpush1.msra.mxu0 0.0
    %521 = vmatprep.subr.mxu0 0.0
    %522 = vmatpush1.msra.mxu0 0.0
    %523 = vmatprep.subr.mxu0 0.0
    %524 = vmatpush1.msra.mxu0 0.0
    %525 = vmatprep.subr.mxu0 0.0
    %526 = vmatpush1.msra.mxu0 0.0
    %527 = vmatprep.subr.mxu0 0.0
    %528 = vmatpush1.msra.mxu0 0.0
    %529 = vmatprep.subr.mxu0 0.0
    %530 = vmatpush1.msra.mxu0 0.0
    %531 = vmatprep.subr.mxu0 0.0
    %532 = vmatpush1.msra.mxu0 0.0
    %533 = vmatprep.subr.mxu0 0.0
    %534 = vmatpush1.msra.mxu0 0.0
    %535 = vmatprep.subr.mxu0 0.0
    %536 = vmatpush1.msra.mxu0 0.0
    %537 = vmatprep.subr.mxu0 0.0
    %538 = vmatpush1.msra.mxu0 0.0
    %539 = vmatprep.subr.mxu0 0.0
    %540 = vmatpush1.msra.mxu0 0.0
    %541 = vmatprep.subr.mxu0 0.0
    %542 = vmatpush1.msra.mxu0 0.0
    %543 = vmatprep.subr.mxu0 0.0
    %544 = vmatpush1.msra.mxu0 0.0
    %545 = vmatprep.subr.mxu0 0.0
    %546 = vmatpush1.msra.mxu0 0.0
    %547 = vmatprep.subr.mxu0 0.0
    %548 = vmatpush1.msra.mxu0 0.0
    %549 = vmatprep.subr.mxu0 0.0
    %550 = vmatpush1.msra.mxu0 0.0
    %551 = vmatprep.subr.mxu0 0.0
    %552 = vmatpush1.msra.mxu0 0.0
    %553 = vmatprep.subr.mxu0 0.0
    %554 = vmatpush1.msra.mxu0 0.0
    %555 = vmatprep.subr.mxu0 0.0
    %556 = vmatpush1.msra.mxu0 0.0
    %557 = vmatprep.mubr.f32.mxu0 0.0
    %v558 = vand.u32 %v92, 4294901760
    %v559 = vsub.f32 %v92, %v558
    %v560 = vand.u32 %v559, 4294901760
    %561 = vmatmul.mubr.f32.gmra.mrb[0].mxu0 %v560
    %v562 = vpop.f32.mrb[0].mxu0
    %v563 = vadd.f32 %v471, %v562
    %v564 = vpop.f32.mrb[0].mxu0
    %v565 = vadd.f32 %v473, %v564
    %566 = vdwg.mxu0
    %v567 = vand.u32 %v46, 4294901760
    %v568 = vsub.f32 %v46, %v567
    %v569 = vand.u32 %v568, 4294901760
    %570 = vmatprep.subr.mxu0 %v569
    %v571 = vand.u32 %v45, 4294901760
    %v572 = vsub.f32 %v45, %v571
    %v573 = vand.u32 %v572, 4294901760
    %574 = vmatpush1.msra.mxu0 %v573
    %v575 = vand.u32 %v51, 4294901760
    %v576 = vsub.f32 %v51, %v575
    %v577 = vand.u32 %v576, 4294901760
    %578 = vmatprep.subr.mxu0 %v577
    %v579 = vand.u32 %v50, 4294901760
    %v580 = vsub.f32 %v50, %v579
    %v581 = vand.u32 %v580, 4294901760
    %582 = vmatpush1.msra.mxu0 %v581
    %v583 = vand.u32 %v56, 4294901760
    %v584 = vsub.f32 %v56, %v583
    %v585 = vand.u32 %v584, 4294901760
    %586 = vmatprep.subr.mxu0 %v585
    %v587 = vand.u32 %v55, 4294901760
    %v588 = vsub.f32 %v55, %v587
    %v589 = vand.u32 %v588, 4294901760
    %590 = vmatpush1.msra.mxu0 %v589
    %v591 = vand.u32 %v61, 4294901760
    %v592 = vsub.f32 %v61, %v591
    %v593 = vand.u32 %v592, 4294901760
    %594 = vmatprep.subr.mxu0 %v593
    %v595 = vand.u32 %v60, 4294901760
    %v596 = vsub.f32 %v60, %v595
    %v597 = vand.u32 %v596, 4294901760
    %598 = vmatpush1.msra.mxu0 %v597
    %v599 = vand.u32 %v66, 4294901760
    %v600 = vsub.f32 %v66, %v599
    %v601 = vand.u32 %v600, 4294901760
    %602 = vmatprep.subr.mxu0 %v601
    %v603 = vand.u32 %v65, 4294901760
    %v604 = vsub.f32 %v65, %v603
    %v605 = vand.u32 %v604, 4294901760
    %606 = vmatpush1.msra.mxu0 %v605
    %v607 = vand.u32 %v71, 4294901760
    %v608 = vsub.f32 %v71, %v607
    %v609 = vand.u32 %v608, 4294901760
    %610 = vmatprep.subr.mxu0 %v609
    %v611 = vand.u32 %v70, 4294901760
    %v612 = vsub.f32 %v70, %v611
    %v613 = vand.u32 %v612, 4294901760
    %614 = vmatpush1.msra.mxu0 %v613
    %v615 = vand.u32 %v76, 4294901760
    %v616 = vsub.f32 %v76, %v615
    %v617 = vand.u32 %v616, 4294901760
    %618 = vmatprep.subr.mxu0 %v617
    %v619 = vand.u32 %v75, 4294901760
    %v620 = vsub.f32 %v75, %v619
    %v621 = vand.u32 %v620, 4294901760
    %622 = vmatpush1.msra.mxu0 %v621
    %v623 = vand.u32 %v81, 4294901760
    %v624 = vsub.f32 %v81, %v623
    %v625 = vand.u32 %v624, 4294901760
    %626 = vmatprep.subr.mxu0 %v625
    %v627 = vand.u32 %v80, 4294901760
    %v628 = vsub.f32 %v80, %v627
    %v629 = vand.u32 %v628, 4294901760
    %630 = vmatpush1.msra.mxu0 %v629
    %v631 = vand.u32 %v99, 4294901760
    %v632 = vsub.f32 %v99, %v631
    %v633 = vand.u32 %v632, 4294901760
    %634 = vmatprep.subr.mxu0 %v633
    %v635 = vand.u32 %v96, 4294901760
    %v636 = vsub.f32 %v96, %v635
    %v637 = vand.u32 %v636, 4294901760
    %638 = vmatpush1.msra.mxu0 %v637
    %639 = vmatprep.subr.mxu0 0.0
    %640 = vmatpush1.msra.mxu0 0.0
    %641 = vmatprep.subr.mxu0 0.0
    %642 = vmatpush1.msra.mxu0 0.0
    %643 = vmatprep.subr.mxu0 0.0
    %644 = vmatpush1.msra.mxu0 0.0
    %645 = vmatprep.subr.mxu0 0.0
    %646 = vmatpush1.msra.mxu0 0.0
    %647 = vmatprep.subr.mxu0 0.0
    %648 = vmatpush1.msra.mxu0 0.0
    %649 = vmatprep.subr.mxu0 0.0
    %650 = vmatpush1.msra.mxu0 0.0
    %651 = vmatprep.subr.mxu0 0.0
    %652 = vmatpush1.msra.mxu0 0.0
    %653 = vmatprep.subr.mxu0 0.0
    %654 = vmatpush1.msra.mxu0 0.0
    %655 = vmatprep.subr.mxu0 0.0
    %656 = vmatpush1.msra.mxu0 0.0
    %657 = vmatprep.subr.mxu0 0.0
    %658 = vmatpush1.msra.mxu0 0.0
    %659 = vmatprep.subr.mxu0 0.0
    %660 = vmatpush1.msra.mxu0 0.0
    %661 = vmatprep.subr.mxu0 0.0
    %662 = vmatpush1.msra.mxu0 0.0
    %663 = vmatprep.subr.mxu0 0.0
    %664 = vmatpush1.msra.mxu0 0.0
    %665 = vmatprep.subr.mxu0 0.0
    %666 = vmatpush1.msra.mxu0 0.0
    %667 = vmatprep.subr.mxu0 0.0
    %668 = vmatpush1.msra.mxu0 0.0
    %669 = vmatprep.subr.mxu0 0.0
    %670 = vmatpush1.msra.mxu0 0.0
    %671 = vmatprep.subr.mxu0 0.0
    %672 = vmatpush1.msra.mxu0 0.0
    %673 = vmatprep.subr.mxu0 0.0
    %674 = vmatpush1.msra.mxu0 0.0
    %675 = vmatprep.subr.mxu0 0.0
    %676 = vmatpush1.msra.mxu0 0.0
    %677 = vmatprep.subr.mxu0 0.0
    %678 = vmatpush1.msra.mxu0 0.0
    %679 = vmatprep.subr.mxu0 0.0
    %680 = vmatpush1.msra.mxu0 0.0
    %681 = vmatprep.subr.mxu0 0.0
    %682 = vmatpush1.msra.mxu0 0.0
    %683 = vmatprep.subr.mxu0 0.0
    %684 = vmatpush1.msra.mxu0 0.0
    %685 = vmatprep.mubr.f32.mxu0 0.0
    %v686 = vand.u32 %v92, 4294901760
    %687 = vmatmul.mubr.f32.gmra.mrb[0].mxu0 %v686
    %v688 = vpop.f32.mrb[0].mxu0
    %v689 = vadd.f32 %v563, %v688
    %v690 = vpop.f32.mrb[0].mxu0
    %v691 = vadd.f32 %v565, %v690
    %692 = vdwg.mxu0
    %v693 = vand.u32 %v46, 4294901760
    %694 = vmatprep.subr.mxu0 %v693
    %v695 = vand.u32 %v45, 4294901760
    %696 = vmatpush1.msra.mxu0 %v695
    %v697 = vand.u32 %v51, 4294901760
    %698 = vmatprep.subr.mxu0 %v697
    %v699 = vand.u32 %v50, 4294901760
    %700 = vmatpush1.msra.mxu0 %v699
    %v701 = vand.u32 %v56, 4294901760
    %702 = vmatprep.subr.mxu0 %v701
    %v703 = vand.u32 %v55, 4294901760
    %704 = vmatpush1.msra.mxu0 %v703
    %v705 = vand.u32 %v61, 4294901760
    %706 = vmatprep.subr.mxu0 %v705
    %v707 = vand.u32 %v60, 4294901760
    %708 = vmatpush1.msra.mxu0 %v707
    %v709 = vand.u32 %v66, 4294901760
    %710 = vmatprep.subr.mxu0 %v709
    %v711 = vand.u32 %v65, 4294901760
    %712 = vmatpush1.msra.mxu0 %v711
    %v713 = vand.u32 %v71, 4294901760
    %714 = vmatprep.subr.mxu0 %v713
    %v715 = vand.u32 %v70, 4294901760
    %716 = vmatpush1.msra.mxu0 %v715
    %v717 = vand.u32 %v76, 4294901760
    %718 = vmatprep.subr.mxu0 %v717
    %v719 = vand.u32 %v75, 4294901760
    %720 = vmatpush1.msra.mxu0 %v719
    %v721 = vand.u32 %v81, 4294901760
    %722 = vmatprep.subr.mxu0 %v721
    %v723 = vand.u32 %v80, 4294901760
    %724 = vmatpush1.msra.mxu0 %v723
    %v725 = vand.u32 %v99, 4294901760
    %726 = vmatprep.subr.mxu0 %v725
    %v727 = vand.u32 %v96, 4294901760
    %728 = vmatpush1.msra.mxu0 %v727
    %729 = vmatprep.subr.mxu0 0.0
    %730 = vmatpush1.msra.mxu0 0.0
    %731 = vmatprep.subr.mxu0 0.0
    %732 = vmatpush1.msra.mxu0 0.0
    %733 = vmatprep.subr.mxu0 0.0
    %734 = vmatpush1.msra.mxu0 0.0
    %735 = vmatprep.subr.mxu0 0.0
    %736 = vmatpush1.msra.mxu0 0.0
    %737 = vmatprep.subr.mxu0 0.0
    %738 = vmatpush1.msra.mxu0 0.0
    %739 = vmatprep.subr.mxu0 0.0
    %740 = vmatpush1.msra.mxu0 0.0
    %741 = vmatprep.subr.mxu0 0.0
    %742 = vmatpush1.msra.mxu0 0.0
    %743 = vmatprep.subr.mxu0 0.0
    %744 = vmatpush1.msra.mxu0 0.0
    %745 = vmatprep.subr.mxu0 0.0
    %746 = vmatpush1.msra.mxu0 0.0
    %747 = vmatprep.subr.mxu0 0.0
    %748 = vmatpush1.msra.mxu0 0.0
    %749 = vmatprep.subr.mxu0 0.0
    %750 = vmatpush1.msra.mxu0 0.0
    %751 = vmatprep.subr.mxu0 0.0
    %752 = vmatpush1.msra.mxu0 0.0
    %753 = vmatprep.subr.mxu0 0.0
    %754 = vmatpush1.msra.mxu0 0.0
    %755 = vmatprep.subr.mxu0 0.0
    %756 = vmatpush1.msra.mxu0 0.0
    %757 = vmatprep.subr.mxu0 0.0
    %758 = vmatpush1.msra.mxu0 0.0
    %759 = vmatprep.subr.mxu0 0.0
    %760 = vmatpush1.msra.mxu0 0.0
    %761 = vmatprep.subr.mxu0 0.0
    %762 = vmatpush1.msra.mxu0 0.0
    %763 = vmatprep.subr.mxu0 0.0
    %764 = vmatpush1.msra.mxu0 0.0
    %765 = vmatprep.subr.mxu0 0.0
    %766 = vmatpush1.msra.mxu0 0.0
    %767 = vmatprep.subr.mxu0 0.0
    %768 = vmatpush1.msra.mxu0 0.0
    %769 = vmatprep.subr.mxu0 0.0
    %770 = vmatpush1.msra.mxu0 0.0
    %771 = vmatprep.subr.mxu0 0.0
    %772 = vmatpush1.msra.mxu0 0.0
    %773 = vmatprep.subr.mxu0 0.0
    %774 = vmatpush1.msra.mxu0 0.0
    %775 = vmatprep.mubr.f32.mxu0 0.0
    %v776 = vand.u32 %v92, 4294901760
    %777 = vmatmul.mubr.f32.gmra.mrb[0].mxu0 %v776
    %v778 = vpop.f32.mrb[0].mxu0
    %v779 = vadd.f32 %v689, %v778
    %v780 = vpop.f32.mrb[0].mxu0
    %v781 = vadd.f32 %v691, %v780
    %782 = vdwg.mxu0
    %v783 = vand.u32 %v48, 4294901760
    %784 = vmatprep.subr.mxu0 %v783
    %v785 = vand.u32 %v47, 4294901760
    %786 = vmatpush1.msra.mxu0 %v785
    %v787 = vand.u32 %v53, 4294901760
    %788 = vmatprep.subr.mxu0 %v787
    %v789 = vand.u32 %v52, 4294901760
    %790 = vmatpush1.msra.mxu0 %v789
    %v791 = vand.u32 %v58, 4294901760
    %792 = vmatprep.subr.mxu0 %v791
    %v793 = vand.u32 %v57, 4294901760
    %794 = vmatpush1.msra.mxu0 %v793
    %v795 = vand.u32 %v63, 4294901760
    %796 = vmatprep.subr.mxu0 %v795
    %v797 = vand.u32 %v62, 4294901760
    %798 = vmatpush1.msra.mxu0 %v797
    %v799 = vand.u32 %v68, 4294901760
    %800 = vmatprep.subr.mxu0 %v799
    %v801 = vand.u32 %v67, 4294901760
    %802 = vmatpush1.msra.mxu0 %v801
    %v803 = vand.u32 %v73, 4294901760
    %804 = vmatprep.subr.mxu0 %v803
    %v805 = vand.u32 %v72, 4294901760
    %806 = vmatpush1.msra.mxu0 %v805
    %v807 = vand.u32 %v78, 4294901760
    %808 = vmatprep.subr.mxu0 %v807
    %v809 = vand.u32 %v77, 4294901760
    %810 = vmatpush1.msra.mxu0 %v809
    %v811 = vand.u32 %v83, 4294901760
    %812 = vmatprep.subr.mxu0 %v811
    %v813 = vand.u32 %v82, 4294901760
    %814 = vmatpush1.msra.mxu0 %v813
    %v815 = vand.u32 %v105, 4294901760
    %816 = vmatprep.subr.mxu0 %v815
    %v817 = vand.u32 %v102, 4294901760
    %818 = vmatpush1.msra.mxu0 %v817
    %819 = vmatprep.subr.mxu0 0.0
    %820 = vmatpush1.msra.mxu0 0.0
    %821 = vmatprep.subr.mxu0 0.0
    %822 = vmatpush1.msra.mxu0 0.0
    %823 = vmatprep.subr.mxu0 0.0
    %824 = vmatpush1.msra.mxu0 0.0
    %825 = vmatprep.subr.mxu0 0.0
    %826 = vmatpush1.msra.mxu0 0.0
    %827 = vmatprep.subr.mxu0 0.0
    %828 = vmatpush1.msra.mxu0 0.0
    %829 = vmatprep.subr.mxu0 0.0
    %830 = vmatpush1.msra.mxu0 0.0
    %831 = vmatprep.subr.mxu0 0.0
    %832 = vmatpush1.msra.mxu0 0.0
    %833 = vmatprep.subr.mxu0 0.0
    %834 = vmatpush1.msra.mxu0 0.0
    %835 = vmatprep.subr.mxu0 0.0
    %836 = vmatpush1.msra.mxu0 0.0
    %837 = vmatprep.subr.mxu0 0.0
    %838 = vmatpush1.msra.mxu0 0.0
    %839 = vmatprep.subr.mxu0 0.0
    %840 = vmatpush1.msra.mxu0 0.0
    %841 = vmatprep.subr.mxu0 0.0
    %842 = vmatpush1.msra.mxu0 0.0
    %843 = vmatprep.subr.mxu0 0.0
    %844 = vmatpush1.msra.mxu0 0.0
    %845 = vmatprep.subr.mxu0 0.0
    %846 = vmatpush1.msra.mxu0 0.0
    %847 = vmatprep.subr.mxu0 0.0
    %848 = vmatpush1.msra.mxu0 0.0
    %849 = vmatprep.subr.mxu0 0.0
    %850 = vmatpush1.msra.mxu0 0.0
    %851 = vmatprep.subr.mxu0 0.0
    %852 = vmatpush1.msra.mxu0 0.0
    %853 = vmatprep.subr.mxu0 0.0
    %854 = vmatpush1.msra.mxu0 0.0
    %855 = vmatprep.subr.mxu0 0.0
    %856 = vmatpush1.msra.mxu0 0.0
    %857 = vmatprep.subr.mxu0 0.0
    %858 = vmatpush1.msra.mxu0 0.0
    %859 = vmatprep.subr.mxu0 0.0
    %860 = vmatpush1.msra.mxu0 0.0
    %861 = vmatprep.subr.mxu0 0.0
    %862 = vmatpush1.msra.mxu0 0.0
    %863 = vmatprep.subr.mxu0 0.0
    %864 = vmatpush1.msra.mxu0 0.0
    %865 = vmatprep.mubr.f32.mxu0 0.0
    %v866 = vand.u32 %v92, 4294901760
    %v867 = vsub.f32 %v92, %v866
    %v868 = vand.u32 %v867, 4294901760
    %v869 = vsub.f32 %v867, %v868
    %v870 = vand.u32 %v869, 4294901760
    %871 = vmatmul.mubr.f32.gmra.mrb[0].mxu0 %v870
    %v872 = vpop.f32.mrb[0].mxu0
    %v873 = vadd.f32 0.0, %v872
    %v874 = vpop.f32.mrb[0].mxu0
    %v875 = vadd.f32 0.0, %v874
    %876 = vdwg.mxu0
    %v877 = vand.u32 %v48, 4294901760
    %v878 = vsub.f32 %v48, %v877
    %v879 = vand.u32 %v878, 4294901760
    %v880 = vsub.f32 %v878, %v879
    %v881 = vand.u32 %v880, 4294901760
    %882 = vmatprep.subr.mxu0 %v881
    %v883 = vand.u32 %v47, 4294901760
    %v884 = vsub.f32 %v47, %v883
    %v885 = vand.u32 %v884, 4294901760
    %v886 = vsub.f32 %v884, %v885
    %v887 = vand.u32 %v886, 4294901760
    %888 = vmatpush1.msra.mxu0 %v887
    %v889 = vand.u32 %v53, 4294901760
    %v890 = vsub.f32 %v53, %v889
    %v891 = vand.u32 %v890, 4294901760
    %v892 = vsub.f32 %v890, %v891
    %v893 = vand.u32 %v892, 4294901760
    %894 = vmatprep.subr.mxu0 %v893
    %v895 = vand.u32 %v52, 4294901760
    %v896 = vsub.f32 %v52, %v895
    %v897 = vand.u32 %v896, 4294901760
    %v898 = vsub.f32 %v896, %v897
    %v899 = vand.u32 %v898, 4294901760
    %900 = vmatpush1.msra.mxu0 %v899
    %v901 = vand.u32 %v58, 4294901760
    %v902 = vsub.f32 %v58, %v901
    %v903 = vand.u32 %v902, 4294901760
    %v904 = vsub.f32 %v902, %v903
    %v905 = vand.u32 %v904, 4294901760
    %906 = vmatprep.subr.mxu0 %v905
    %v907 = vand.u32 %v57, 4294901760
    %v908 = vsub.f32 %v57, %v907
    %v909 = vand.u32 %v908, 4294901760
    %v910 = vsub.f32 %v908, %v909
    %v911 = vand.u32 %v910, 4294901760
    %912 = vmatpush1.msra.mxu0 %v911
    %v913 = vand.u32 %v63, 4294901760
    %v914 = vsub.f32 %v63, %v913
    %v915 = vand.u32 %v914, 4294901760
    %v916 = vsub.f32 %v914, %v915
    %v917 = vand.u32 %v916, 4294901760
    %918 = vmatprep.subr.mxu0 %v917
    %v919 = vand.u32 %v62, 4294901760
    %v920 = vsub.f32 %v62, %v919
    %v921 = vand.u32 %v920, 4294901760
    %v922 = vsub.f32 %v920, %v921
    %v923 = vand.u32 %v922, 4294901760
    %924 = vmatpush1.msra.mxu0 %v923
    %v925 = vand.u32 %v68, 4294901760
    %v926 = vsub.f32 %v68, %v925
    %v927 = vand.u32 %v926, 4294901760
    %v928 = vsub.f32 %v926, %v927
    %v929 = vand.u32 %v928, 4294901760
    %930 = vmatprep.subr.mxu0 %v929
    %v931 = vand.u32 %v67, 4294901760
    %v932 = vsub.f32 %v67, %v931
    %v933 = vand.u32 %v932, 4294901760
    %v934 = vsub.f32 %v932, %v933
    %v935 = vand.u32 %v934, 4294901760
    %936 = vmatpush1.msra.mxu0 %v935
    %v937 = vand.u32 %v73, 4294901760
    %v938 = vsub.f32 %v73, %v937
    %v939 = vand.u32 %v938, 4294901760
    %v940 = vsub.f32 %v938, %v939
    %v941 = vand.u32 %v940, 4294901760
    %942 = vmatprep.subr.mxu0 %v941
    %v943 = vand.u32 %v72, 4294901760
    %v944 = vsub.f32 %v72, %v943
    %v945 = vand.u32 %v944, 4294901760
    %v946 = vsub.f32 %v944, %v945
    %v947 = vand.u32 %v946, 4294901760
    %948 = vmatpush1.msra.mxu0 %v947
    %v949 = vand.u32 %v78, 4294901760
    %v950 = vsub.f32 %v78, %v949
    %v951 = vand.u32 %v950, 4294901760
    %v952 = vsub.f32 %v950, %v951
    %v953 = vand.u32 %v952, 4294901760
    %954 = vmatprep.subr.mxu0 %v953
    %v955 = vand.u32 %v77, 4294901760
    %v956 = vsub.f32 %v77, %v955
    %v957 = vand.u32 %v956, 4294901760
    %v958 = vsub.f32 %v956, %v957
    %v959 = vand.u32 %v958, 4294901760
    %960 = vmatpush1.msra.mxu0 %v959
    %v961 = vand.u32 %v83, 4294901760
    %v962 = vsub.f32 %v83, %v961
    %v963 = vand.u32 %v962, 4294901760
    %v964 = vsub.f32 %v962, %v963
    %v965 = vand.u32 %v964, 4294901760
    %966 = vmatprep.subr.mxu0 %v965
    %v967 = vand.u32 %v82, 4294901760
    %v968 = vsub.f32 %v82, %v967
    %v969 = vand.u32 %v968, 4294901760
    %v970 = vsub.f32 %v968, %v969
    %v971 = vand.u32 %v970, 4294901760
    %972 = vmatpush1.msra.mxu0 %v971
    %v973 = vand.u32 %v105, 4294901760
    %v974 = vsub.f32 %v105, %v973
    %v975 = vand.u32 %v974, 4294901760
    %v976 = vsub.f32 %v974, %v975
    %v977 = vand.u32 %v976, 4294901760
    %978 = vmatprep.subr.mxu0 %v977
    %v979 = vand.u32 %v102, 4294901760
    %v980 = vsub.f32 %v102, %v979
    %v981 = vand.u32 %v980, 4294901760
    %v982 = vsub.f32 %v980, %v981
    %v983 = vand.u32 %v982, 4294901760
    %984 = vmatpush1.msra.mxu0 %v983
    %985 = vmatprep.subr.mxu0 0.0
    %986 = vmatpush1.msra.mxu0 0.0
    %987 = vmatprep.subr.mxu0 0.0
    %988 = vmatpush1.msra.mxu0 0.0
    %989 = vmatprep.subr.mxu0 0.0
    %990 = vmatpush1.msra.mxu0 0.0
    %991 = vmatprep.subr.mxu0 0.0
    %992 = vmatpush1.msra.mxu0 0.0
    %993 = vmatprep.subr.mxu0 0.0
    %994 = vmatpush1.msra.mxu0 0.0
    %995 = vmatprep.subr.mxu0 0.0
    %996 = vmatpush1.msra.mxu0 0.0
    %997 = vmatprep.subr.mxu0 0.0
    %998 = vmatpush1.msra.mxu0 0.0
    %999 = vmatprep.subr.mxu0 0.0
    %1000 = vmatpush1.msra.mxu0 0.0
    %1001 = vmatprep.subr.mxu0 0.0
    %1002 = vmatpush1.msra.mxu0 0.0
    %1003 = vmatprep.subr.mxu0 0.0
    %1004 = vmatpush1.msra.mxu0 0.0
    %1005 = vmatprep.subr.mxu0 0.0
    %1006 = vmatpush1.msra.mxu0 0.0
    %1007 = vmatprep.subr.mxu0 0.0
    %1008 = vmatpush1.msra.mxu0 0.0
    %1009 = vmatprep.subr.mxu0 0.0
    %1010 = vmatpush1.msra.mxu0 0.0
    %1011 = vmatprep.subr.mxu0 0.0
    %1012 = vmatpush1.msra.mxu0 0.0
    %1013 = vmatprep.subr.mxu0 0.0
    %1014 = vmatpush1.msra.mxu0 0.0
    %1015 = vmatprep.subr.mxu0 0.0
    %1016 = vmatpush1.msra.mxu0 0.0
    %1017 = vmatprep.subr.mxu0 0.0
    %1018 = vmatpush1.msra.mxu0 0.0
    %1019 = vmatprep.subr.mxu0 0.0
    %1020 = vmatpush1.msra.mxu0 0.0
    %1021 = vmatprep.subr.mxu0 0.0
    %1022 = vmatpush1.msra.mxu0 0.0
    %1023 = vmatprep.subr.mxu0 0.0
    %1024 = vmatpush1.msra.mxu0 0.0
    %1025 = vmatprep.subr.mxu0 0.0
    %1026 = vmatpush1.msra.mxu0 0.0
    %1027 = vmatprep.subr.mxu0 0.0
    %1028 = vmatpush1.msra.mxu0 0.0
    %1029 = vmatprep.subr.mxu0 0.0
    %1030 = vmatpush1.msra.mxu0 0.0
    %1031 = vmatprep.mubr.f32.mxu0 0.0
    %v1032 = vand.u32 %v92, 4294901760
    %1033 = vmatmul.mubr.f32.gmra.mrb[0].mxu0 %v1032
    %v1034 = vpop.f32.mrb[0].mxu0
    %v1035 = vadd.f32 %v873, %v1034
    %v1036 = vpop.f32.mrb[0].mxu0
    %v1037 = vadd.f32 %v875, %v1036
    %1038 = vdwg.mxu0
    %v1039 = vand.u32 %v48, 4294901760
    %v1040 = vsub.f32 %v48, %v1039
    %1041 = vmatprep.subr.mxu0 %v1040
    %v1042 = vand.u32 %v47, 4294901760
    %v1043 = vsub.f32 %v47, %v1042
    %1044 = vmatpush1.msra.mxu0 %v1043
    %v1045 = vand.u32 %v53, 4294901760
    %v1046 = vsub.f32 %v53, %v1045
    %1047 = vmatprep.subr.mxu0 %v1046
    %v1048 = vand.u32 %v52, 4294901760
    %v1049 = vsub.f32 %v52, %v1048
    %1050 = vmatpush1.msra.mxu0 %v1049
    %v1051 = vand.u32 %v58, 4294901760
    %v1052 = vsub.f32 %v58, %v1051
    %1053 = vmatprep.subr.mxu0 %v1052
    %v1054 = vand.u32 %v57, 4294901760
    %v1055 = vsub.f32 %v57, %v1054
    %1056 = vmatpush1.msra.mxu0 %v1055
    %v1057 = vand.u32 %v63, 4294901760
    %v1058 = vsub.f32 %v63, %v1057
    %1059 = vmatprep.subr.mxu0 %v1058
    %v1060 = vand.u32 %v62, 4294901760
    %v1061 = vsub.f32 %v62, %v1060
    %1062 = vmatpush1.msra.mxu0 %v1061
    %v1063 = vand.u32 %v68, 4294901760
    %v1064 = vsub.f32 %v68, %v1063
    %1065 = vmatprep.subr.mxu0 %v1064
    %v1066 = vand.u32 %v67, 4294901760
    %v1067 = vsub.f32 %v67, %v1066
    %1068 = vmatpush1.msra.mxu0 %v1067
    %v1069 = vand.u32 %v73, 4294901760
    %v1070 = vsub.f32 %v73, %v1069
    %1071 = vmatprep.subr.mxu0 %v1070
    %v1072 = vand.u32 %v72, 4294901760
    %v1073 = vsub.f32 %v72, %v1072
    %1074 = vmatpush1.msra.mxu0 %v1073
    %v1075 = vand.u32 %v78, 4294901760
    %v1076 = vsub.f32 %v78, %v1075
    %1077 = vmatprep.subr.mxu0 %v1076
    %v1078 = vand.u32 %v77, 4294901760
    %v1079 = vsub.f32 %v77, %v1078
    %1080 = vmatpush1.msra.mxu0 %v1079
    %v1081 = vand.u32 %v83, 4294901760
    %v1082 = vsub.f32 %v83, %v1081
    %1083 = vmatprep.subr.mxu0 %v1082
    %v1084 = vand.u32 %v82, 4294901760
    %v1085 = vsub.f32 %v82, %v1084
    %1086 = vmatpush1.msra.mxu0 %v1085
    %v1087 = vand.u32 %v105, 4294901760
    %v1088 = vsub.f32 %v105, %v1087
    %1089 = vmatprep.subr.mxu0 %v1088
    %v1090 = vand.u32 %v102, 4294901760
    %v1091 = vsub.f32 %v102, %v1090
    %1092 = vmatpush1.msra.mxu0 %v1091
    %1093 = vmatprep.subr.mxu0 0.0
    %1094 = vmatpush1.msra.mxu0 0.0
    %1095 = vmatprep.subr.mxu0 0.0
    %1096 = vmatpush1.msra.mxu0 0.0
    %1097 = vmatprep.subr.mxu0 0.0
    %1098 = vmatpush1.msra.mxu0 0.0
    %1099 = vmatprep.subr.mxu0 0.0
    %1100 = vmatpush1.msra.mxu0 0.0
    %1101 = vmatprep.subr.mxu0 0.0
    %1102 = vmatpush1.msra.mxu0 0.0
    %1103 = vmatprep.subr.mxu0 0.0
    %1104 = vmatpush1.msra.mxu0 0.0
    %1105 = vmatprep.subr.mxu0 0.0
    %1106 = vmatpush1.msra.mxu0 0.0
    %1107 = vmatprep.subr.mxu0 0.0
    %1108 = vmatpush1.msra.mxu0 0.0
    %1109 = vmatprep.subr.mxu0 0.0
    %1110 = vmatpush1.msra.mxu0 0.0
    %1111 = vmatprep.subr.mxu0 0.0
    %1112 = vmatpush1.msra.mxu0 0.0
    %1113 = vmatprep.subr.mxu0 0.0
    %1114 = vmatpush1.msra.mxu0 0.0
    %1115 = vmatprep.subr.mxu0 0.0
    %1116 = vmatpush1.msra.mxu0 0.0
    %1117 = vmatprep.subr.mxu0 0.0
    %1118 = vmatpush1.msra.mxu0 0.0
    %1119 = vmatprep.subr.mxu0 0.0
    %1120 = vmatpush1.msra.mxu0 0.0
    %1121 = vmatprep.subr.mxu0 0.0
    %1122 = vmatpush1.msra.mxu0 0.0
    %1123 = vmatprep.subr.mxu0 0.0
    %1124 = vmatpush1.msra.mxu0 0.0
    %1125 = vmatprep.subr.mxu0 0.0
    %1126 = vmatpush1.msra.mxu0 0.0
    %1127 = vmatprep.subr.mxu0 0.0
    %1128 = vmatpush1.msra.mxu0 0.0
    %1129 = vmatprep.subr.mxu0 0.0
    %1130 = vmatpush1.msra.mxu0 0.0
    %1131 = vmatprep.subr.mxu0 0.0
    %1132 = vmatpush1.msra.mxu0 0.0
    %1133 = vmatprep.subr.mxu0 0.0
    %1134 = vmatpush1.msra.mxu0 0.0
    %1135 = vmatprep.subr.mxu0 0.0
    %1136 = vmatpush1.msra.mxu0 0.0
    %1137 = vmatprep.subr.mxu0 0.0
    %1138 = vmatpush1.msra.mxu0 0.0
    %1139 = vmatprep.mubr.f32.mxu0 0.0
    %v1140 = vand.u32 %v92, 4294901760
    %v1141 = vsub.f32 %v92, %v1140
    %1142 = vmatmul.mubr.f32.gmra.mrb[0].mxu0 %v1141
    %v1143 = vpop.f32.mrb[0].mxu0
    %v1144 = vadd.f32 %v1035, %v1143
    %v1145 = vpop.f32.mrb[0].mxu0
    %v1146 = vadd.f32 %v1037, %v1145
    %1147 = vdwg.mxu0
    %v1148 = vand.u32 %v48, 4294901760
    %1149 = vmatprep.subr.mxu0 %v1148
    %v1150 = vand.u32 %v47, 4294901760
    %1151 = vmatpush1.msra.mxu0 %v1150
    %v1152 = vand.u32 %v53, 4294901760
    %1153 = vmatprep.subr.mxu0 %v1152
    %v1154 = vand.u32 %v52, 4294901760
    %1155 = vmatpush1.msra.mxu0 %v1154
    %v1156 = vand.u32 %v58, 4294901760
    %1157 = vmatprep.subr.mxu0 %v1156
    %v1158 = vand.u32 %v57, 4294901760
    %1159 = vmatpush1.msra.mxu0 %v1158
    %v1160 = vand.u32 %v63, 4294901760
    %1161 = vmatprep.subr.mxu0 %v1160
    %v1162 = vand.u32 %v62, 4294901760
    %1163 = vmatpush1.msra.mxu0 %v1162
    %v1164 = vand.u32 %v68, 4294901760
    %1165 = vmatprep.subr.mxu0 %v1164
    %v1166 = vand.u32 %v67, 4294901760
    %1167 = vmatpush1.msra.mxu0 %v1166
    %v1168 = vand.u32 %v73, 4294901760
    %1169 = vmatprep.subr.mxu0 %v1168
    %v1170 = vand.u32 %v72, 4294901760
    %1171 = vmatpush1.msra.mxu0 %v1170
    %v1172 = vand.u32 %v78, 4294901760
    %1173 = vmatprep.subr.mxu0 %v1172
    %v1174 = vand.u32 %v77, 4294901760
    %1175 = vmatpush1.msra.mxu0 %v1174
    %v1176 = vand.u32 %v83, 4294901760
    %1177 = vmatprep.subr.mxu0 %v1176
    %v1178 = vand.u32 %v82, 4294901760
    %1179 = vmatpush1.msra.mxu0 %v1178
    %v1180 = vand.u32 %v105, 4294901760
    %1181 = vmatprep.subr.mxu0 %v1180
    %v1182 = vand.u32 %v102, 4294901760
    %1183 = vmatpush1.msra.mxu0 %v1182
    %1184 = vmatprep.subr.mxu0 0.0
    %1185 = vmatpush1.msra.mxu0 0.0
    %1186 = vmatprep.subr.mxu0 0.0
    %1187 = vmatpush1.msra.mxu0 0.0
    %1188 = vmatprep.subr.mxu0 0.0
    %1189 = vmatpush1.msra.mxu0 0.0
    %1190 = vmatprep.subr.mxu0 0.0
    %1191 = vmatpush1.msra.mxu0 0.0
    %1192 = vmatprep.subr.mxu0 0.0
    %1193 = vmatpush1.msra.mxu0 0.0
    %1194 = vmatprep.subr.mxu0 0.0
    %1195 = vmatpush1.msra.mxu0 0.0
    %1196 = vmatprep.subr.mxu0 0.0
    %1197 = vmatpush1.msra.mxu0 0.0
    %1198 = vmatprep.subr.mxu0 0.0
    %1199 = vmatpush1.msra.mxu0 0.0
    %1200 = vmatprep.subr.mxu0 0.0
    %1201 = vmatpush1.msra.mxu0 0.0
    %1202 = vmatprep.subr.mxu0 0.0
    %1203 = vmatpush1.msra.mxu0 0.0
    %1204 = vmatprep.subr.mxu0 0.0
    %1205 = vmatpush1.msra.mxu0 0.0
    %1206 = vmatprep.subr.mxu0 0.0
    %1207 = vmatpush1.msra.mxu0 0.0
    %1208 = vmatprep.subr.mxu0 0.0
    %1209 = vmatpush1.msra.mxu0 0.0
    %1210 = vmatprep.subr.mxu0 0.0
    %1211 = vmatpush1.msra.mxu0 0.0
    %1212 = vmatprep.subr.mxu0 0.0
    %1213 = vmatpush1.msra.mxu0 0.0
    %1214 = vmatprep.subr.mxu0 0.0
    %1215 = vmatpush1.msra.mxu0 0.0
    %1216 = vmatprep.subr.mxu0 0.0
    %1217 = vmatpush1.msra.mxu0 0.0
    %1218 = vmatprep.subr.mxu0 0.0
    %1219 = vmatpush1.msra.mxu0 0.0
    %1220 = vmatprep.subr.mxu0 0.0
    %1221 = vmatpush1.msra.mxu0 0.0
    %1222 = vmatprep.subr.mxu0 0.0
    %1223 = vmatpush1.msra.mxu0 0.0
    %1224 = vmatprep.subr.mxu0 0.0
    %1225 = vmatpush1.msra.mxu0 0.0
    %1226 = vmatprep.subr.mxu0 0.0
    %1227 = vmatpush1.msra.mxu0 0.0
    %1228 = vmatprep.subr.mxu0 0.0
    %1229 = vmatpush1.msra.mxu0 0.0
    %1230 = vmatprep.mubr.f32.mxu0 0.0
    %v1231 = vand.u32 %v92, 4294901760
    %v1232 = vsub.f32 %v92, %v1231
    %v1233 = vand.u32 %v1232, 4294901760
    %1234 = vmatmul.mubr.f32.gmra.mrb[0].mxu0 %v1233
    %v1235 = vpop.f32.mrb[0].mxu0
    %v1236 = vadd.f32 %v1144, %v1235
    %v1237 = vpop.f32.mrb[0].mxu0
    %v1238 = vadd.f32 %v1146, %v1237
    %1239 = vdwg.mxu0
    %v1240 = vand.u32 %v48, 4294901760
    %v1241 = vsub.f32 %v48, %v1240
    %v1242 = vand.u32 %v1241, 4294901760
    %1243 = vmatprep.subr.mxu0 %v1242
    %v1244 = vand.u32 %v47, 4294901760
    %v1245 = vsub.f32 %v47, %v1244
    %v1246 = vand.u32 %v1245, 4294901760
    %1247 = vmatpush1.msra.mxu0 %v1246
    %v1248 = vand.u32 %v53, 4294901760
    %v1249 = vsub.f32 %v53, %v1248
    %v1250 = vand.u32 %v1249, 4294901760
    %1251 = vmatprep.subr.mxu0 %v1250
    %v1252 = vand.u32 %v52, 4294901760
    %v1253 = vsub.f32 %v52, %v1252
    %v1254 = vand.u32 %v1253, 4294901760
    %1255 = vmatpush1.msra.mxu0 %v1254
    %v1256 = vand.u32 %v58, 4294901760
    %v1257 = vsub.f32 %v58, %v1256
    %v1258 = vand.u32 %v1257, 4294901760
    %1259 = vmatprep.subr.mxu0 %v1258
    %v1260 = vand.u32 %v57, 4294901760
    %v1261 = vsub.f32 %v57, %v1260
    %v1262 = vand.u32 %v1261, 4294901760
    %1263 = vmatpush1.msra.mxu0 %v1262
    %v1264 = vand.u32 %v63, 4294901760
    %v1265 = vsub.f32 %v63, %v1264
    %v1266 = vand.u32 %v1265, 4294901760
    %1267 = vmatprep.subr.mxu0 %v1266
    %v1268 = vand.u32 %v62, 4294901760
    %v1269 = vsub.f32 %v62, %v1268
    %v1270 = vand.u32 %v1269, 4294901760
    %1271 = vmatpush1.msra.mxu0 %v1270
    %v1272 = vand.u32 %v68, 4294901760
    %v1273 = vsub.f32 %v68, %v1272
    %v1274 = vand.u32 %v1273, 4294901760
    %1275 = vmatprep.subr.mxu0 %v1274
    %v1276 = vand.u32 %v67, 4294901760
    %v1277 = vsub.f32 %v67, %v1276
    %v1278 = vand.u32 %v1277, 4294901760
    %1279 = vmatpush1.msra.mxu0 %v1278
    %v1280 = vand.u32 %v73, 4294901760
    %v1281 = vsub.f32 %v73, %v1280
    %v1282 = vand.u32 %v1281, 4294901760
    %1283 = vmatprep.subr.mxu0 %v1282
    %v1284 = vand.u32 %v72, 4294901760
    %v1285 = vsub.f32 %v72, %v1284
    %v1286 = vand.u32 %v1285, 4294901760
    %1287 = vmatpush1.msra.mxu0 %v1286
    %v1288 = vand.u32 %v78, 4294901760
    %v1289 = vsub.f32 %v78, %v1288
    %v1290 = vand.u32 %v1289, 4294901760
    %1291 = vmatprep.subr.mxu0 %v1290
    %v1292 = vand.u32 %v77, 4294901760
    %v1293 = vsub.f32 %v77, %v1292
    %v1294 = vand.u32 %v1293, 4294901760
    %1295 = vmatpush1.msra.mxu0 %v1294
    %v1296 = vand.u32 %v83, 4294901760
    %v1297 = vsub.f32 %v83, %v1296
    %v1298 = vand.u32 %v1297, 4294901760
    %1299 = vmatprep.subr.mxu0 %v1298
    %v1300 = vand.u32 %v82, 4294901760
    %v1301 = vsub.f32 %v82, %v1300
    %v1302 = vand.u32 %v1301, 4294901760
    %1303 = vmatpush1.msra.mxu0 %v1302
    %v1304 = vand.u32 %v105, 4294901760
    %v1305 = vsub.f32 %v105, %v1304
    %v1306 = vand.u32 %v1305, 4294901760
    %1307 = vmatprep.subr.mxu0 %v1306
    %v1308 = vand.u32 %v102, 4294901760
    %v1309 = vsub.f32 %v102, %v1308
    %v1310 = vand.u32 %v1309, 4294901760
    %1311 = vmatpush1.msra.mxu0 %v1310
    %1312 = vmatprep.subr.mxu0 0.0
    %1313 = vmatpush1.msra.mxu0 0.0
    %1314 = vmatprep.subr.mxu0 0.0
    %1315 = vmatpush1.msra.mxu0 0.0
    %1316 = vmatprep.subr.mxu0 0.0
    %1317 = vmatpush1.msra.mxu0 0.0
    %1318 = vmatprep.subr.mxu0 0.0
    %1319 = vmatpush1.msra.mxu0 0.0
    %1320 = vmatprep.subr.mxu0 0.0
    %1321 = vmatpush1.msra.mxu0 0.0
    %1322 = vmatprep.subr.mxu0 0.0
    %1323 = vmatpush1.msra.mxu0 0.0
    %1324 = vmatprep.subr.mxu0 0.0
    %1325 = vmatpush1.msra.mxu0 0.0
    %1326 = vmatprep.subr.mxu0 0.0
    %1327 = vmatpush1.msra.mxu0 0.0
    %1328 = vmatprep.subr.mxu0 0.0
    %1329 = vmatpush1.msra.mxu0 0.0
    %1330 = vmatprep.subr.mxu0 0.0
    %1331 = vmatpush1.msra.mxu0 0.0
    %1332 = vmatprep.subr.mxu0 0.0
    %1333 = vmatpush1.msra.mxu0 0.0
    %1334 = vmatprep.subr.mxu0 0.0
    %1335 = vmatpush1.msra.mxu0 0.0
    %1336 = vmatprep.subr.mxu0 0.0
    %1337 = vmatpush1.msra.mxu0 0.0
    %1338 = vmatprep.subr.mxu0 0.0
    %1339 = vmatpush1.msra.mxu0 0.0
    %1340 = vmatprep.subr.mxu0 0.0
    %1341 = vmatpush1.msra.mxu0 0.0
    %1342 = vmatprep.subr.mxu0 0.0
    %1343 = vmatpush1.msra.mxu0 0.0
    %1344 = vmatprep.subr.mxu0 0.0
    %1345 = vmatpush1.msra.mxu0 0.0
    %1346 = vmatprep.subr.mxu0 0.0
    %1347 = vmatpush1.msra.mxu0 0.0
    %1348 = vmatprep.subr.mxu0 0.0
    %1349 = vmatpush1.msra.mxu0 0.0
    %1350 = vmatprep.subr.mxu0 0.0
    %1351 = vmatpush1.msra.mxu0 0.0
    %1352 = vmatprep.subr.mxu0 0.0
    %1353 = vmatpush1.msra.mxu0 0.0
    %1354 = vmatprep.subr.mxu0 0.0
    %1355 = vmatpush1.msra.mxu0 0.0
    %1356 = vmatprep.subr.mxu0 0.0
    %1357 = vmatpush1.msra.mxu0 0.0
    %1358 = vmatprep.mubr.f32.mxu0 0.0
    %v1359 = vand.u32 %v92, 4294901760
    %1360 = vmatmul.mubr.f32.gmra.mrb[0].mxu0 %v1359
    %v1361 = vpop.f32.mrb[0].mxu0
    %v1362 = vadd.f32 %v1236, %v1361
    %v1363 = vpop.f32.mrb[0].mxu0
    %v1364 = vadd.f32 %v1238, %v1363
    %1365 = vdwg.mxu0
    %v1366 = vand.u32 %v48, 4294901760
    %1367 = vmatprep.subr.mxu0 %v1366
    %v1368 = vand.u32 %v47, 4294901760
    %1369 = vmatpush1.msra.mxu0 %v1368
    %v1370 = vand.u32 %v53, 4294901760
    %1371 = vmatprep.subr.mxu0 %v1370
    %v1372 = vand.u32 %v52, 4294901760
    %1373 = vmatpush1.msra.mxu0 %v1372
    %v1374 = vand.u32 %v58, 4294901760
    %1375 = vmatprep.subr.mxu0 %v1374
    %v1376 = vand.u32 %v57, 4294901760
    %1377 = vmatpush1.msra.mxu0 %v1376
    %v1378 = vand.u32 %v63, 4294901760
    %1379 = vmatprep.subr.mxu0 %v1378
    %v1380 = vand.u32 %v62, 4294901760
    %1381 = vmatpush1.msra.mxu0 %v1380
    %v1382 = vand.u32 %v68, 4294901760
    %1383 = vmatprep.subr.mxu0 %v1382
    %v1384 = vand.u32 %v67, 4294901760
    %1385 = vmatpush1.msra.mxu0 %v1384
    %v1386 = vand.u32 %v73, 4294901760
    %1387 = vmatprep.subr.mxu0 %v1386
    %v1388 = vand.u32 %v72, 4294901760
    %1389 = vmatpush1.msra.mxu0 %v1388
    %v1390 = vand.u32 %v78, 4294901760
    %1391 = vmatprep.subr.mxu0 %v1390
    %v1392 = vand.u32 %v77, 4294901760
    %1393 = vmatpush1.msra.mxu0 %v1392
    %v1394 = vand.u32 %v83, 4294901760
    %1395 = vmatprep.subr.mxu0 %v1394
    %v1396 = vand.u32 %v82, 4294901760
    %1397 = vmatpush1.msra.mxu0 %v1396
    %v1398 = vand.u32 %v105, 4294901760
    %1399 = vmatprep.subr.mxu0 %v1398
    %v1400 = vand.u32 %v102, 4294901760
    %1401 = vmatpush1.msra.mxu0 %v1400
    %1402 = vmatprep.subr.mxu0 0.0
    %1403 = vmatpush1.msra.mxu0 0.0
    %1404 = vmatprep.subr.mxu0 0.0
    %1405 = vmatpush1.msra.mxu0 0.0
    %1406 = vmatprep.subr.mxu0 0.0
    %1407 = vmatpush1.msra.mxu0 0.0
    %1408 = vmatprep.subr.mxu0 0.0
    %1409 = vmatpush1.msra.mxu0 0.0
    %1410 = vmatprep.subr.mxu0 0.0
    %1411 = vmatpush1.msra.mxu0 0.0
    %1412 = vmatprep.subr.mxu0 0.0
    %1413 = vmatpush1.msra.mxu0 0.0
    %1414 = vmatprep.subr.mxu0 0.0
    %1415 = vmatpush1.msra.mxu0 0.0
    %1416 = vmatprep.subr.mxu0 0.0
    %1417 = vmatpush1.msra.mxu0 0.0
    %1418 = vmatprep.subr.mxu0 0.0
    %1419 = vmatpush1.msra.mxu0 0.0
    %1420 = vmatprep.subr.mxu0 0.0
    %1421 = vmatpush1.msra.mxu0 0.0
    %1422 = vmatprep.subr.mxu0 0.0
    %1423 = vmatpush1.msra.mxu0 0.0
    %1424 = vmatprep.subr.mxu0 0.0
    %1425 = vmatpush1.msra.mxu0 0.0
    %1426 = vmatprep.subr.mxu0 0.0
    %1427 = vmatpush1.msra.mxu0 0.0
    %1428 = vmatprep.subr.mxu0 0.0
    %1429 = vmatpush1.msra.mxu0 0.0
    %1430 = vmatprep.subr.mxu0 0.0
    %1431 = vmatpush1.msra.mxu0 0.0
    %1432 = vmatprep.subr.mxu0 0.0
    %1433 = vmatpush1.msra.mxu0 0.0
    %1434 = vmatprep.subr.mxu0 0.0
    %1435 = vmatpush1.msra.mxu0 0.0
    %1436 = vmatprep.subr.mxu0 0.0
    %1437 = vmatpush1.msra.mxu0 0.0
    %1438 = vmatprep.subr.mxu0 0.0
    %1439 = vmatpush1.msra.mxu0 0.0
    %1440 = vmatprep.subr.mxu0 0.0
    %1441 = vmatpush1.msra.mxu0 0.0
    %1442 = vmatprep.subr.mxu0 0.0
    %1443 = vmatpush1.msra.mxu0 0.0
    %1444 = vmatprep.subr.mxu0 0.0
    %1445 = vmatpush1.msra.mxu0 0.0
    %1446 = vmatprep.subr.mxu0 0.0
    %1447 = vmatpush1.msra.mxu0 0.0
    %1448 = vmatprep.mubr.f32.mxu0 0.0
    %v1449 = vand.u32 %v92, 4294901760
    %1450 = vmatmul.mubr.f32.gmra.mrb[0].mxu0 %v1449
    %v1451 = vpop.f32.mrb[0].mxu0
    %v1452 = vadd.f32 %v1362, %v1451
    %v1453 = vpop.f32.mrb[0].mxu0
    %v1454 = vadd.f32 %v1364, %v1453
    %1455 = vdwg.mxu0
    %1456 = vmatprep.subr.mxu0 0.0
    %v1457 = vand.u32 %v49, 4294901760
    %1458 = vmatpush1.msra.mxu0 %v1457
    %1459 = vmatprep.subr.mxu0 0.0
    %v1460 = vand.u32 %v54, 4294901760
    %1461 = vmatpush1.msra.mxu0 %v1460
    %1462 = vmatprep.subr.mxu0 0.0
    %v1463 = vand.u32 %v59, 4294901760
    %1464 = vmatpush1.msra.mxu0 %v1463
    %1465 = vmatprep.subr.mxu0 0.0
    %v1466 = vand.u32 %v64, 4294901760
    %1467 = vmatpush1.msra.mxu0 %v1466
    %1468 = vmatprep.subr.mxu0 0.0
    %v1469 = vand.u32 %v69, 4294901760
    %1470 = vmatpush1.msra.mxu0 %v1469
    %1471 = vmatprep.subr.mxu0 0.0
    %v1472 = vand.u32 %v74, 4294901760
    %1473 = vmatpush1.msra.mxu0 %v1472
    %1474 = vmatprep.subr.mxu0 0.0
    %v1475 = vand.u32 %v79, 4294901760
    %1476 = vmatpush1.msra.mxu0 %v1475
    %1477 = vmatprep.subr.mxu0 0.0
    %v1478 = vand.u32 %v84, 4294901760
    %1479 = vmatpush1.msra.mxu0 %v1478
    %1480 = vmatprep.subr.mxu0 0.0
    %v1481 = vand.u32 %v108, 4294901760
    %1482 = vmatpush1.msra.mxu0 %v1481
    %1483 = vmatprep.subr.mxu0 0.0
    %1484 = vmatpush1.msra.mxu0 0.0
    %1485 = vmatprep.subr.mxu0 0.0
    %1486 = vmatpush1.msra.mxu0 0.0
    %1487 = vmatprep.subr.mxu0 0.0
    %1488 = vmatpush1.msra.mxu0 0.0
    %1489 = vmatprep.subr.mxu0 0.0
    %1490 = vmatpush1.msra.mxu0 0.0
    %1491 = vmatprep.subr.mxu0 0.0
    %1492 = vmatpush1.msra.mxu0 0.0
    %1493 = vmatprep.subr.mxu0 0.0
    %1494 = vmatpush1.msra.mxu0 0.0
    %1495 = vmatprep.subr.mxu0 0.0
    %1496 = vmatpush1.msra.mxu0 0.0
    %1497 = vmatprep.subr.mxu0 0.0
    %1498 = vmatpush1.msra.mxu0 0.0
    %1499 = vmatprep.subr.mxu0 0.0
    %1500 = vmatpush1.msra.mxu0 0.0
    %1501 = vmatprep.subr.mxu0 0.0
    %1502 = vmatpush1.msra.mxu0 0.0
    %1503 = vmatprep.subr.mxu0 0.0
    %1504 = vmatpush1.msra.mxu0 0.0
    %1505 = vmatprep.subr.mxu0 0.0
    %1506 = vmatpush1.msra.mxu0 0.0
    %1507 = vmatprep.subr.mxu0 0.0
    %1508 = vmatpush1.msra.mxu0 0.0
    %1509 = vmatprep.subr.mxu0 0.0
    %1510 = vmatpush1.msra.mxu0 0.0
    %1511 = vmatprep.subr.mxu0 0.0
    %1512 = vmatpush1.msra.mxu0 0.0
    %1513 = vmatprep.subr.mxu0 0.0
    %1514 = vmatpush1.msra.mxu0 0.0
    %1515 = vmatprep.subr.mxu0 0.0
    %1516 = vmatpush1.msra.mxu0 0.0
    %1517 = vmatprep.subr.mxu0 0.0
    %1518 = vmatpush1.msra.mxu0 0.0
    %1519 = vmatprep.subr.mxu0 0.0
    %1520 = vmatpush1.msra.mxu0 0.0
    %1521 = vmatprep.subr.mxu0 0.0
    %1522 = vmatpush1.msra.mxu0 0.0
    %1523 = vmatprep.subr.mxu0 0.0
    %1524 = vmatpush1.msra.mxu0 0.0
    %1525 = vmatprep.subr.mxu0 0.0
    %1526 = vmatpush1.msra.mxu0 0.0
    %1527 = vmatprep.subr.mxu0 0.0
    %1528 = vmatpush1.msra.mxu0 0.0
    %1529 = vmatprep.mubr.f32.mxu0 0.0
    %v1530 = vand.u32 %v92, 4294901760
    %v1531 = vsub.f32 %v92, %v1530
    %v1532 = vand.u32 %v1531, 4294901760
    %v1533 = vsub.f32 %v1531, %v1532
    %v1534 = vand.u32 %v1533, 4294901760
    %1535 = vmatmul.mubr.f32.gmra.mrb[0].mxu0 %v1534
    %v1536 = vpop.f32.mrb[0].mxu0
    %v1537 = vadd.f32 0.0, %v1536
    %v1538 = vpop.f32.mrb[0].mxu0
    %1539 = vdwg.mxu0
    %1540 = vmatprep.subr.mxu0 0.0
    %v1541 = vand.u32 %v49, 4294901760
    %v1542 = vsub.f32 %v49, %v1541
    %v1543 = vand.u32 %v1542, 4294901760
    %v1544 = vsub.f32 %v1542, %v1543
    %v1545 = vand.u32 %v1544, 4294901760
    %1546 = vmatpush1.msra.mxu0 %v1545
    %1547 = vmatprep.subr.mxu0 0.0
    %v1548 = vand.u32 %v54, 4294901760
    %v1549 = vsub.f32 %v54, %v1548
    %v1550 = vand.u32 %v1549, 4294901760
    %v1551 = vsub.f32 %v1549, %v1550
    %v1552 = vand.u32 %v1551, 4294901760
    %1553 = vmatpush1.msra.mxu0 %v1552
    %1554 = vmatprep.subr.mxu0 0.0
    %v1555 = vand.u32 %v59, 4294901760
    %v1556 = vsub.f32 %v59, %v1555
    %v1557 = vand.u32 %v1556, 4294901760
    %v1558 = vsub.f32 %v1556, %v1557
    %v1559 = vand.u32 %v1558, 4294901760
    %1560 = vmatpush1.msra.mxu0 %v1559
    %1561 = vmatprep.subr.mxu0 0.0
    %v1562 = vand.u32 %v64, 4294901760
    %v1563 = vsub.f32 %v64, %v1562
    %v1564 = vand.u32 %v1563, 4294901760
    %v1565 = vsub.f32 %v1563, %v1564
    %v1566 = vand.u32 %v1565, 4294901760
    %1567 = vmatpush1.msra.mxu0 %v1566
    %1568 = vmatprep.subr.mxu0 0.0
    %v1569 = vand.u32 %v69, 4294901760
    %v1570 = vsub.f32 %v69, %v1569
    %v1571 = vand.u32 %v1570, 4294901760
    %v1572 = vsub.f32 %v1570, %v1571
    %v1573 = vand.u32 %v1572, 4294901760
    %1574 = vmatpush1.msra.mxu0 %v1573
    %1575 = vmatprep.subr.mxu0 0.0
    %v1576 = vand.u32 %v74, 4294901760
    %v1577 = vsub.f32 %v74, %v1576
    %v1578 = vand.u32 %v1577, 4294901760
    %v1579 = vsub.f32 %v1577, %v1578
    %v1580 = vand.u32 %v1579, 4294901760
    %1581 = vmatpush1.msra.mxu0 %v1580
    %1582 = vmatprep.subr.mxu0 0.0
    %v1583 = vand.u32 %v79, 4294901760
    %v1584 = vsub.f32 %v79, %v1583
    %v1585 = vand.u32 %v1584, 4294901760
    %v1586 = vsub.f32 %v1584, %v1585
    %v1587 = vand.u32 %v1586, 4294901760
    %1588 = vmatpush1.msra.mxu0 %v1587
    %1589 = vmatprep.subr.mxu0 0.0
    %v1590 = vand.u32 %v84, 4294901760
    %v1591 = vsub.f32 %v84, %v1590
    %v1592 = vand.u32 %v1591, 4294901760
    %v1593 = vsub.f32 %v1591, %v1592
    %v1594 = vand.u32 %v1593, 4294901760
    %1595 = vmatpush1.msra.mxu0 %v1594
    %1596 = vmatprep.subr.mxu0 0.0
    %v1597 = vand.u32 %v108, 4294901760
    %v1598 = vsub.f32 %v108, %v1597
    %v1599 = vand.u32 %v1598, 4294901760
    %v1600 = vsub.f32 %v1598, %v1599
    %v1601 = vand.u32 %v1600, 4294901760
    %1602 = vmatpush1.msra.mxu0 %v1601
    %1603 = vmatprep.subr.mxu0 0.0
    %1604 = vmatpush1.msra.mxu0 0.0
    %1605 = vmatprep.subr.mxu0 0.0
    %1606 = vmatpush1.msra.mxu0 0.0
    %1607 = vmatprep.subr.mxu0 0.0
    %1608 = vmatpush1.msra.mxu0 0.0
    %1609 = vmatprep.subr.mxu0 0.0
    %1610 = vmatpush1.msra.mxu0 0.0
    %1611 = vmatprep.subr.mxu0 0.0
    %1612 = vmatpush1.msra.mxu0 0.0
    %1613 = vmatprep.subr.mxu0 0.0
    %1614 = vmatpush1.msra.mxu0 0.0
    %1615 = vmatprep.subr.mxu0 0.0
    %1616 = vmatpush1.msra.mxu0 0.0
    %1617 = vmatprep.subr.mxu0 0.0
    %1618 = vmatpush1.msra.mxu0 0.0
    %1619 = vmatprep.subr.mxu0 0.0
    %1620 = vmatpush1.msra.mxu0 0.0
    %1621 = vmatprep.subr.mxu0 0.0
    %1622 = vmatpush1.msra.mxu0 0.0
    %1623 = vmatprep.subr.mxu0 0.0
    %1624 = vmatpush1.msra.mxu0 0.0
    %1625 = vmatprep.subr.mxu0 0.0
    %1626 = vmatpush1.msra.mxu0 0.0
    %1627 = vmatprep.subr.mxu0 0.0
    %1628 = vmatpush1.msra.mxu0 0.0
    %1629 = vmatprep.subr.mxu0 0.0
    %1630 = vmatpush1.msra.mxu0 0.0
    %1631 = vmatprep.subr.mxu0 0.0
    %1632 = vmatpush1.msra.mxu0 0.0
    %1633 = vmatprep.subr.mxu0 0.0
    %1634 = vmatpush1.msra.mxu0 0.0
    %1635 = vmatprep.subr.mxu0 0.0
    %1636 = vmatpush1.msra.mxu0 0.0
    %1637 = vmatprep.subr.mxu0 0.0
    %1638 = vmatpush1.msra.mxu0 0.0
    %1639 = vmatprep.subr.mxu0 0.0
    %1640 = vmatpush1.msra.mxu0 0.0
    %1641 = vmatprep.subr.mxu0 0.0
    %1642 = vmatpush1.msra.mxu0 0.0
    %1643 = vmatprep.subr.mxu0 0.0
    %1644 = vmatpush1.msra.mxu0 0.0
    %1645 = vmatprep.subr.mxu0 0.0
    %1646 = vmatpush1.msra.mxu0 0.0
    %1647 = vmatprep.subr.mxu0 0.0
    %1648 = vmatpush1.msra.mxu0 0.0
    %1649 = vmatprep.mubr.f32.mxu0 0.0
    %v1650 = vand.u32 %v92, 4294901760
    %1651 = vmatmul.mubr.f32.gmra.mrb[0].mxu0 %v1650
    %v1652 = vpop.f32.mrb[0].mxu0
    %v1653 = vadd.f32 %v1537, %v1652
    %v1654 = vpop.f32.mrb[0].mxu0
    %1655 = vdwg.mxu0
    %1656 = vmatprep.subr.mxu0 0.0
    %v1657 = vand.u32 %v49, 4294901760
    %v1658 = vsub.f32 %v49, %v1657
    %1659 = vmatpush1.msra.mxu0 %v1658
    %1660 = vmatprep.subr.mxu0 0.0
    %v1661 = vand.u32 %v54, 4294901760
    %v1662 = vsub.f32 %v54, %v1661
    %1663 = vmatpush1.msra.mxu0 %v1662
    %1664 = vmatprep.subr.mxu0 0.0
    %v1665 = vand.u32 %v59, 4294901760
    %v1666 = vsub.f32 %v59, %v1665
    %1667 = vmatpush1.msra.mxu0 %v1666
    %1668 = vmatprep.subr.mxu0 0.0
    %v1669 = vand.u32 %v64, 4294901760
    %v1670 = vsub.f32 %v64, %v1669
    %1671 = vmatpush1.msra.mxu0 %v1670
    %1672 = vmatprep.subr.mxu0 0.0
    %v1673 = vand.u32 %v69, 4294901760
    %v1674 = vsub.f32 %v69, %v1673
    %1675 = vmatpush1.msra.mxu0 %v1674
    %1676 = vmatprep.subr.mxu0 0.0
    %v1677 = vand.u32 %v74, 4294901760
    %v1678 = vsub.f32 %v74, %v1677
    %1679 = vmatpush1.msra.mxu0 %v1678
    %1680 = vmatprep.subr.mxu0 0.0
    %v1681 = vand.u32 %v79, 4294901760
    %v1682 = vsub.f32 %v79, %v1681
    %1683 = vmatpush1.msra.mxu0 %v1682
    %1684 = vmatprep.subr.mxu0 0.0
    %v1685 = vand.u32 %v84, 4294901760
    %v1686 = vsub.f32 %v84, %v1685
    %1687 = vmatpush1.msra.mxu0 %v1686
    %1688 = vmatprep.subr.mxu0 0.0
    %v1689 = vand.u32 %v108, 4294901760
    %v1690 = vsub.f32 %v108, %v1689
    %1691 = vmatpush1.msra.mxu0 %v1690
    %1692 = vmatprep.subr.mxu0 0.0
    %1693 = vmatpush1.msra.mxu0 0.0
    %1694 = vmatprep.subr.mxu0 0.0
    %1695 = vmatpush1.msra.mxu0 0.0
    %1696 = vmatprep.subr.mxu0 0.0
    %1697 = vmatpush1.msra.mxu0 0.0
    %1698 = vmatprep.subr.mxu0 0.0
    %1699 = vmatpush1.msra.mxu0 0.0
    %1700 = vmatprep.subr.mxu0 0.0
    %1701 = vmatpush1.msra.mxu0 0.0
    %1702 = vmatprep.subr.mxu0 0.0
    %1703 = vmatpush1.msra.mxu0 0.0
    %1704 = vmatprep.subr.mxu0 0.0
    %1705 = vmatpush1.msra.mxu0 0.0
    %1706 = vmatprep.subr.mxu0 0.0
    %1707 = vmatpush1.msra.mxu0 0.0
    %1708 = vmatprep.subr.mxu0 0.0
    %1709 = vmatpush1.msra.mxu0 0.0
    %1710 = vmatprep.subr.mxu0 0.0
    %1711 = vmatpush1.msra.mxu0 0.0
    %1712 = vmatprep.subr.mxu0 0.0
    %1713 = vmatpush1.msra.mxu0 0.0
    %1714 = vmatprep.subr.mxu0 0.0
    %1715 = vmatpush1.msra.mxu0 0.0
    %1716 = vmatprep.subr.mxu0 0.0
    %1717 = vmatpush1.msra.mxu0 0.0
    %1718 = vmatprep.subr.mxu0 0.0
    %1719 = vmatpush1.msra.mxu0 0.0
    %1720 = vmatprep.subr.mxu0 0.0
    %1721 = vmatpush1.msra.mxu0 0.0
    %1722 = vmatprep.subr.mxu0 0.0
    %1723 = vmatpush1.msra.mxu0 0.0
    %1724 = vmatprep.subr.mxu0 0.0
    %1725 = vmatpush1.msra.mxu0 0.0
    %1726 = vmatprep.subr.mxu0 0.0
    %1727 = vmatpush1.msra.mxu0 0.0
    %1728 = vmatprep.subr.mxu0 0.0
    %1729 = vmatpush1.msra.mxu0 0.0
    %1730 = vmatprep.subr.mxu0 0.0
    %1731 = vmatpush1.msra.mxu0 0.0
    %1732 = vmatprep.subr.mxu0 0.0
    %1733 = vmatpush1.msra.mxu0 0.0
    %1734 = vmatprep.subr.mxu0 0.0
    %1735 = vmatpush1.msra.mxu0 0.0
    %1736 = vmatprep.subr.mxu0 0.0
    %1737 = vmatpush1.msra.mxu0 0.0
    %1738 = vmatprep.mubr.f32.mxu0 0.0
    %v1739 = vand.u32 %v92, 4294901760
    %v1740 = vsub.f32 %v92, %v1739
    %1741 = vmatmul.mubr.f32.gmra.mrb[0].mxu0 %v1740
    %v1742 = vpop.f32.mrb[0].mxu0
    %v1743 = vadd.f32 %v1653, %v1742
    %v1744 = vpop.f32.mrb[0].mxu0
    %1745 = vdwg.mxu0
    %1746 = vmatprep.subr.mxu0 0.0
    %v1747 = vand.u32 %v49, 4294901760
    %1748 = vmatpush1.msra.mxu0 %v1747
    %1749 = vmatprep.subr.mxu0 0.0
    %v1750 = vand.u32 %v54, 4294901760
    %1751 = vmatpush1.msra.mxu0 %v1750
    %1752 = vmatprep.subr.mxu0 0.0
    %v1753 = vand.u32 %v59, 4294901760
    %1754 = vmatpush1.msra.mxu0 %v1753
    %1755 = vmatprep.subr.mxu0 0.0
    %v1756 = vand.u32 %v64, 4294901760
    %1757 = vmatpush1.msra.mxu0 %v1756
    %1758 = vmatprep.subr.mxu0 0.0
    %v1759 = vand.u32 %v69, 4294901760
    %1760 = vmatpush1.msra.mxu0 %v1759
    %1761 = vmatprep.subr.mxu0 0.0
    %v1762 = vand.u32 %v74, 4294901760
    %1763 = vmatpush1.msra.mxu0 %v1762
    %1764 = vmatprep.subr.mxu0 0.0
    %v1765 = vand.u32 %v79, 4294901760
    %1766 = vmatpush1.msra.mxu0 %v1765
    %1767 = vmatprep.subr.mxu0 0.0
    %v1768 = vand.u32 %v84, 4294901760
    %1769 = vmatpush1.msra.mxu0 %v1768
    %1770 = vmatprep.subr.mxu0 0.0
    %v1771 = vand.u32 %v108, 4294901760
    %1772 = vmatpush1.msra.mxu0 %v1771
    %1773 = vmatprep.subr.mxu0 0.0
    %1774 = vmatpush1.msra.mxu0 0.0
    %1775 = vmatprep.subr.mxu0 0.0
    %1776 = vmatpush1.msra.mxu0 0.0
    %1777 = vmatprep.subr.mxu0 0.0
    %1778 = vmatpush1.msra.mxu0 0.0
    %1779 = vmatprep.subr.mxu0 0.0
    %1780 = vmatpush1.msra.mxu0 0.0
    %1781 = vmatprep.subr.mxu0 0.0
    %1782 = vmatpush1.msra.mxu0 0.0
    %1783 = vmatprep.subr.mxu0 0.0
    %1784 = vmatpush1.msra.mxu0 0.0
    %1785 = vmatprep.subr.mxu0 0.0
    %1786 = vmatpush1.msra.mxu0 0.0
    %1787 = vmatprep.subr.mxu0 0.0
    %1788 = vmatpush1.msra.mxu0 0.0
    %1789 = vmatprep.subr.mxu0 0.0
    %1790 = vmatpush1.msra.mxu0 0.0
    %1791 = vmatprep.subr.mxu0 0.0
    %1792 = vmatpush1.msra.mxu0 0.0
    %1793 = vmatprep.subr.mxu0 0.0
    %1794 = vmatpush1.msra.mxu0 0.0
    %1795 = vmatprep.subr.mxu0 0.0
    %1796 = vmatpush1.msra.mxu0 0.0
    %1797 = vmatprep.subr.mxu0 0.0
    %1798 = vmatpush1.msra.mxu0 0.0
    %1799 = vmatprep.subr.mxu0 0.0
    %1800 = vmatpush1.msra.mxu0 0.0
    %1801 = vmatprep.subr.mxu0 0.0
    %1802 = vmatpush1.msra.mxu0 0.0
    %1803 = vmatprep.subr.mxu0 0.0
    %1804 = vmatpush1.msra.mxu0 0.0
    %1805 = vmatprep.subr.mxu0 0.0
    %1806 = vmatpush1.msra.mxu0 0.0
    %1807 = vmatprep.subr.mxu0 0.0
    %1808 = vmatpush1.msra.mxu0 0.0
    %1809 = vmatprep.subr.mxu0 0.0
    %1810 = vmatpush1.msra.mxu0 0.0
    %1811 = vmatprep.subr.mxu0 0.0
    %1812 = vmatpush1.msra.mxu0 0.0
    %1813 = vmatprep.subr.mxu0 0.0
    %1814 = vmatpush1.msra.mxu0 0.0
    %1815 = vmatprep.subr.mxu0 0.0
    %1816 = vmatpush1.msra.mxu0 0.0
    %1817 = vmatprep.subr.mxu0 0.0
    %1818 = vmatpush1.msra.mxu0 0.0
    %1819 = vmatprep.mubr.f32.mxu0 0.0
    %v1820 = vand.u32 %v92, 4294901760
    %v1821 = vsub.f32 %v92, %v1820
    %v1822 = vand.u32 %v1821, 4294901760
    %1823 = vmatmul.mubr.f32.gmra.mrb[0].mxu0 %v1822
    %v1824 = vpop.f32.mrb[0].mxu0
    %v1825 = vadd.f32 %v1743, %v1824
    %v1826 = vpop.f32.mrb[0].mxu0
    %1827 = vdwg.mxu0
    %1828 = vmatprep.subr.mxu0 0.0
    %v1829 = vand.u32 %v49, 4294901760
    %v1830 = vsub.f32 %v49, %v1829
    %v1831 = vand.u32 %v1830, 4294901760
    %1832 = vmatpush1.msra.mxu0 %v1831
    %1833 = vmatprep.subr.mxu0 0.0
    %v1834 = vand.u32 %v54, 4294901760
    %v1835 = vsub.f32 %v54, %v1834
    %v1836 = vand.u32 %v1835, 4294901760
    %1837 = vmatpush1.msra.mxu0 %v1836
    %1838 = vmatprep.subr.mxu0 0.0
    %v1839 = vand.u32 %v59, 4294901760
    %v1840 = vsub.f32 %v59, %v1839
    %v1841 = vand.u32 %v1840, 4294901760
    %1842 = vmatpush1.msra.mxu0 %v1841
    %1843 = vmatprep.subr.mxu0 0.0
    %v1844 = vand.u32 %v64, 4294901760
    %v1845 = vsub.f32 %v64, %v1844
    %v1846 = vand.u32 %v1845, 4294901760
    %1847 = vmatpush1.msra.mxu0 %v1846
    %1848 = vmatprep.subr.mxu0 0.0
    %v1849 = vand.u32 %v69, 4294901760
    %v1850 = vsub.f32 %v69, %v1849
    %v1851 = vand.u32 %v1850, 4294901760
    %1852 = vmatpush1.msra.mxu0 %v1851
    %1853 = vmatprep.subr.mxu0 0.0
    %v1854 = vand.u32 %v74, 4294901760
    %v1855 = vsub.f32 %v74, %v1854
    %v1856 = vand.u32 %v1855, 4294901760
    %1857 = vmatpush1.msra.mxu0 %v1856
    %1858 = vmatprep.subr.mxu0 0.0
    %v1859 = vand.u32 %v79, 4294901760
    %v1860 = vsub.f32 %v79, %v1859
    %v1861 = vand.u32 %v1860, 4294901760
    %1862 = vmatpush1.msra.mxu0 %v1861
    %1863 = vmatprep.subr.mxu0 0.0
    %v1864 = vand.u32 %v84, 4294901760
    %v1865 = vsub.f32 %v84, %v1864
    %v1866 = vand.u32 %v1865, 4294901760
    %1867 = vmatpush1.msra.mxu0 %v1866
    %1868 = vmatprep.subr.mxu0 0.0
    %v1869 = vand.u32 %v108, 4294901760
    %v1870 = vsub.f32 %v108, %v1869
    %v1871 = vand.u32 %v1870, 4294901760
    %1872 = vmatpush1.msra.mxu0 %v1871
    %1873 = vmatprep.subr.mxu0 0.0
    %1874 = vmatpush1.msra.mxu0 0.0
    %1875 = vmatprep.subr.mxu0 0.0
    %1876 = vmatpush1.msra.mxu0 0.0
    %1877 = vmatprep.subr.mxu0 0.0
    %1878 = vmatpush1.msra.mxu0 0.0
    %1879 = vmatprep.subr.mxu0 0.0
    %1880 = vmatpush1.msra.mxu0 0.0
    %1881 = vmatprep.subr.mxu0 0.0
    %1882 = vmatpush1.msra.mxu0 0.0
    %1883 = vmatprep.subr.mxu0 0.0
    %1884 = vmatpush1.msra.mxu0 0.0
    %1885 = vmatprep.subr.mxu0 0.0
    %1886 = vmatpush1.msra.mxu0 0.0
    %1887 = vmatprep.subr.mxu0 0.0
    %1888 = vmatpush1.msra.mxu0 0.0
    %1889 = vmatprep.subr.mxu0 0.0
    %1890 = vmatpush1.msra.mxu0 0.0
    %1891 = vmatprep.subr.mxu0 0.0
    %1892 = vmatpush1.msra.mxu0 0.0
    %1893 = vmatprep.subr.mxu0 0.0
    %1894 = vmatpush1.msra.mxu0 0.0
    %1895 = vmatprep.subr.mxu0 0.0
    %1896 = vmatpush1.msra.mxu0 0.0
    %1897 = vmatprep.subr.mxu0 0.0
    %1898 = vmatpush1.msra.mxu0 0.0
    %1899 = vmatprep.subr.mxu0 0.0
    %1900 = vmatpush1.msra.mxu0 0.0
    %1901 = vmatprep.subr.mxu0 0.0
    %1902 = vmatpush1.msra.mxu0 0.0
    %1903 = vmatprep.subr.mxu0 0.0
    %1904 = vmatpush1.msra.mxu0 0.0
    %1905 = vmatprep.subr.mxu0 0.0
    %1906 = vmatpush1.msra.mxu0 0.0
    %1907 = vmatprep.subr.mxu0 0.0
    %1908 = vmatpush1.msra.mxu0 0.0
    %1909 = vmatprep.subr.mxu0 0.0
    %1910 = vmatpush1.msra.mxu0 0.0
    %1911 = vmatprep.subr.mxu0 0.0
    %1912 = vmatpush1.msra.mxu0 0.0
    %1913 = vmatprep.subr.mxu0 0.0
    %1914 = vmatpush1.msra.mxu0 0.0
    %1915 = vmatprep.subr.mxu0 0.0
    %1916 = vmatpush1.msra.mxu0 0.0
    %1917 = vmatprep.subr.mxu0 0.0
    %1918 = vmatpush1.msra.mxu0 0.0
    %1919 = vmatprep.mubr.f32.mxu0 0.0
    %v1920 = vand.u32 %v92, 4294901760
    %1921 = vmatmul.mubr.f32.gmra.mrb[0].mxu0 %v1920
    %v1922 = vpop.f32.mrb[0].mxu0
    %v1923 = vadd.f32 %v1825, %v1922
    %v1924 = vpop.f32.mrb[0].mxu0
    %1925 = vdwg.mxu0
    %1926 = vmatprep.subr.mxu0 0.0
    %v1927 = vand.u32 %v49, 4294901760
    %1928 = vmatpush1.msra.mxu0 %v1927
    %1929 = vmatprep.subr.mxu0 0.0
    %v1930 = vand.u32 %v54, 4294901760
    %1931 = vmatpush1.msra.mxu0 %v1930
    %1932 = vmatprep.subr.mxu0 0.0
    %v1933 = vand.u32 %v59, 4294901760
    %1934 = vmatpush1.msra.mxu0 %v1933
    %1935 = vmatprep.subr.mxu0 0.0
    %v1936 = vand.u32 %v64, 4294901760
    %1937 = vmatpush1.msra.mxu0 %v1936
    %1938 = vmatprep.subr.mxu0 0.0
    %v1939 = vand.u32 %v69, 4294901760
    %1940 = vmatpush1.msra.mxu0 %v1939
    %1941 = vmatprep.subr.mxu0 0.0
    %v1942 = vand.u32 %v74, 4294901760
    %1943 = vmatpush1.msra.mxu0 %v1942
    %1944 = vmatprep.subr.mxu0 0.0
    %v1945 = vand.u32 %v79, 4294901760
    %1946 = vmatpush1.msra.mxu0 %v1945
    %1947 = vmatprep.subr.mxu0 0.0
    %v1948 = vand.u32 %v84, 4294901760
    %1949 = vmatpush1.msra.mxu0 %v1948
    %1950 = vmatprep.subr.mxu0 0.0
    %v1951 = vand.u32 %v108, 4294901760
    %1952 = vmatpush1.msra.mxu0 %v1951
    %1953 = vmatprep.subr.mxu0 0.0
    %1954 = vmatpush1.msra.mxu0 0.0
    %1955 = vmatprep.subr.mxu0 0.0
    %1956 = vmatpush1.msra.mxu0 0.0
    %1957 = vmatprep.subr.mxu0 0.0
    %1958 = vmatpush1.msra.mxu0 0.0
    %1959 = vmatprep.subr.mxu0 0.0
    %1960 = vmatpush1.msra.mxu0 0.0
    %1961 = vmatprep.subr.mxu0 0.0
    %1962 = vmatpush1.msra.mxu0 0.0
    %1963 = vmatprep.subr.mxu0 0.0
    %1964 = vmatpush1.msra.mxu0 0.0
    %1965 = vmatprep.subr.mxu0 0.0
    %1966 = vmatpush1.msra.mxu0 0.0
    %1967 = vmatprep.subr.mxu0 0.0
    %1968 = vmatpush1.msra.mxu0 0.0
    %1969 = vmatprep.subr.mxu0 0.0
    %1970 = vmatpush1.msra.mxu0 0.0
    %1971 = vmatprep.subr.mxu0 0.0
    %1972 = vmatpush1.msra.mxu0 0.0
    %1973 = vmatprep.subr.mxu0 0.0
    %1974 = vmatpush1.msra.mxu0 0.0
    %1975 = vmatprep.subr.mxu0 0.0
    %1976 = vmatpush1.msra.mxu0 0.0
    %1977 = vmatprep.subr.mxu0 0.0
    %1978 = vmatpush1.msra.mxu0 0.0
    %1979 = vmatprep.subr.mxu0 0.0
    %1980 = vmatpush1.msra.mxu0 0.0
    %1981 = vmatprep.subr.mxu0 0.0
    %1982 = vmatpush1.msra.mxu0 0.0
    %1983 = vmatprep.subr.mxu0 0.0
    %1984 = vmatpush1.msra.mxu0 0.0
    %1985 = vmatprep.subr.mxu0 0.0
    %1986 = vmatpush1.msra.mxu0 0.0
    %1987 = vmatprep.subr.mxu0 0.0
    %1988 = vmatpush1.msra.mxu0 0.0
    %1989 = vmatprep.subr.mxu0 0.0
    %1990 = vmatpush1.msra.mxu0 0.0
    %1991 = vmatprep.subr.mxu0 0.0
    %1992 = vmatpush1.msra.mxu0 0.0
    %1993 = vmatprep.subr.mxu0 0.0
    %1994 = vmatpush1.msra.mxu0 0.0
    %1995 = vmatprep.subr.mxu0 0.0
    %1996 = vmatpush1.msra.mxu0 0.0
    %1997 = vmatprep.subr.mxu0 0.0
    %1998 = vmatpush1.msra.mxu0 0.0
    %1999 = vmatprep.mubr.f32.mxu0 0.0
    %v2000 = vand.u32 %v92, 4294901760
    %2001 = vmatmul.mubr.f32.gmra.mrb[0].mxu0 %v2000
    %v2002 = vpop.f32.mrb[0].mxu0
    %v2003 = vadd.f32 %v1923, %v2002
    %v2004 = vpop.f32.mrb[0].mxu0
    %2005 = vdwg.mxu0
    %v2006 = vld [vmem:[%s2] sm:$0x1f]
    %v2008 = vlaneseq
    %v2009 = vshrl.u32 %v2008, 7
    %v2010 = vsub.s32 0, %v2009
    %v2011 = vrot.slane %v2006, %v2010
    %v2012 = vlaneseq
    %v2013 = vshrl.u32 %v2012, 7
    %v2014 = vsub.s32 1, %v2013
    %v2015 = vrot.slane %v2006, %v2014
    %v2016 = vlaneseq
    %v2017 = vshrl.u32 %v2016, 7
    %v2018 = vsub.s32 2, %v2017
    %v2019 = vrot.slane %v2006, %v2018
    %v2020 = vlaneseq
    %v2021 = vshrl.u32 %v2020, 7
    %v2022 = vsub.s32 3, %v2021
    %v2023 = vrot.slane %v2006, %v2022
    %v2024 = vlaneseq
    %v2025 = vshrl.u32 %v2024, 7
    %v2026 = vsub.s32 4, %v2025
    %v2027 = vrot.slane %v2006, %v2026
    %v2033 = vadd.f32 %v779, %v2011
    %v2034 = vadd.f32 %v781, %v2015
    %v2035 = vadd.f32 %v1452, %v2019
    %v2036 = vadd.f32 %v1454, %v2023
    %v2037 = vadd.f32 %v2003, %v2027
    %v2038 = vand.u32 2147483647, %v2033
    %vm2039 = vcmp.le.f32.partialorder %v2038, 0.7853982
    %vm2040 = vcmp.lt.s32.totalorder %v2033, 0
    %v2041 = vand.u32 %v2033, 2139095040
    %v2042 = vshrl.u32 %v2041, 23
    %v2043 = vsub.s32 %v2042, 127
    %v2044 = vand.u32 2147483647, %v2033
    %v2045 = vand.u32 %v2044, 8388607
    %v2046 = vor.u32 %v2045, 8388608
    %v2047 = vsub.s32 0, %v2046
    %v2048 = vadd.s32 %v2043, 1
    %vm2049 = vcmp.gt.s32.totalorder %v2048, 0
    %v2050 = vsel %vm2049, %v2048, 0
    %v2051 = vshrl.u32 %v2050, 5
    %v2052 = vand.u32 %v2050, 31
    %v2053 = vsub.s32 32, %v2052
    %v2054 = vshrl.u32 683565275, %v2053
    %v2055 = vshll.u32 683565275, %v2052
    %v2056 = vshrl.u32 2475754826, %v2053
    %v2057 = vor.u32 %v2055, %v2056
    %v2058 = vshll.u32 2475754826, %v2052
    %v2059 = vshrl.u32 2131351028, %v2053
    %v2060 = vor.u32 %v2058, %v2059
    %v2061 = vshll.u32 2131351028, %v2052
    %v2062 = vshrl.u32 2102212464, %v2053
    %v2063 = vor.u32 %v2061, %v2062
    %v2064 = vshll.u32 2102212464, %v2052
    %v2065 = vshrl.u32 920167782, %v2053
    %v2066 = vor.u32 %v2064, %v2065
    %v2067 = vshll.u32 920167782, %v2052
    %v2068 = vshrl.u32 1326507024, %v2053
    %v2069 = vor.u32 %v2067, %v2068
    %vm2070 = vcmp.lt.s32.totalorder %v2051, 1
    %vm2071 = vcmp.lt.s32.totalorder %v2051, 2
    %vm2072 = vcmp.lt.s32.totalorder %v2051, 3
    %vm2073 = vcmp.lt.s32.totalorder %v2051, 4
    %v2074 = vsel %vm2070, %v2054, %v2057
    %v2075 = vsel %vm2073, %v2063, 2102212464
    %v2076 = vsel %vm2072, %v2060, %v2075
    %v2077 = vsel %vm2071, %v2074, %v2076
    %v2078 = vsel %vm2070, %v2057, %v2060
    %v2079 = vsel %vm2073, %v2066, 920167782
    %v2080 = vsel %vm2072, %v2063, %v2079
    %v2081 = vsel %vm2071, %v2078, %v2080
    %v2082 = vsel %vm2070, %v2060, %v2063
    %v2083 = vsel %vm2073, %v2069, 1326507024
    %v2084 = vsel %vm2072, %v2066, %v2083
    %v2085 = vsel %vm2071, %v2082, %v2084
    %v2086 = vshll.u32 %v2046, 8
    %v2087 = vmul.u32.u64.compose %v2086, %v2085
    %v2088 = vextract.low.u32 %v2087
    %v2089 = vextract.high.u32 %v2087
    %v2090 = vmul.u32.u64.compose %v2086, %v2081
    %v2091 = vextract.low.u32 %v2090
    %v2092 = vextract.high.u32 %v2090
    %v2093 = vmul.u32 %v2086, %v2077
    %v2094 = vadd.s32 %v2089, %v2091
    %vm2095 = vc.u32 %v2089, %v2091
    %v2096 = vadd.s32 %v2092, 1
    %v2097 = vsel %vm2095, %v2096, %v2092
    %v2098 = vadd.s32 %v2093, %v2097
    %v2099 = vadd.s32 %v2098, 536870912
    %v2100 = vshrl.u32 %v2099, 30
    %v2101 = vshll.u32 %v2100, 30
    %v2102 = vsub.s32 %v2098, %v2101
    %vm2103 = vcmp.lt.s32.totalorder %v2102, 0
    %v2104 = vsub.s32 0, %v2102
    %v2105 = vsel %vm2103, %v2104, %v2102
    %v2106 = vclz %v2105
    %v2107 = vsub.s32 %v2106, 2
    %vm2108 = vcmp.gt.s32.totalorder 0, %v2107
    %v2109 = vsel %vm2108, 0, %v2107
    %v2110 = vsub.s32 32, %v2109
    %v2111 = vshll.u32 %v2102, %v2109
    %v2112 = vshrl.u32 %v2094, %v2110
    %v2113 = vor.u32 %v2111, %v2112
    %v2114 = vsub.s32 4294967266, %v2109
    %v2115 = vadd.s32 %v2114, 127
    %v2116 = vshll.u32 %v2115, 23
    %v2117 = vor.u32 4788187, %v2116
    %v2118 = vand.u32 2147483647, %v2117
    %v2120 = vcvt.s32.f32 %v2113
    %v2121 = vmul.f32 %v2120, %v2118
    %v2122 = vxor.u32 %v2121, 2147483648
    %v2123 = vsel %vm2040, %v2122, %v2121
    %v2124 = vsub.s32 4, %v2100
    %v2125 = vsel %vm2040, %v2124, %v2100
    %v2126 = vsel %vm2039, %v2033, %v2123
    %v2127 = vsel %vm2039, 0, %v2125
    %v2128 = vcosq.f32.pop %v2126
    %v2129 = vsinq.f32.pop %v2126
    %vm2130 = vweird.f32 %v2033
    %v2131 = vadd.s32 %v2127, 3
    %v2132 = vand.u32 %v2131, 3
    %vm2133 = vcmp.lt.s32.totalorder %v2132, 2
    %vm2134 = vcmp.eq.s32.totalorder %v2132, 0
    %v2135 = vxor.u32 %v2129, 2147483648
    %v2136 = vsel %vm2134, %v2128, %v2135
    %vm2137 = vcmp.eq.s32.totalorder %v2132, 2
    %v2138 = vxor.u32 %v2128, 2147483648
    %v2139 = vsel %vm2137, %v2138, %v2129
    %v2140 = vsel %vm2133, %v2136, %v2139
    %v2141 = vsel %vm2130, nan, %v2140
    %v2142 = vand.u32 2147483647, %v2034
    %vm2143 = vcmp.le.f32.partialorder %v2142, 0.7853982
    %vm2144 = vcmp.lt.s32.totalorder %v2034, 0
    %v2145 = vand.u32 %v2034, 2139095040
    %v2146 = vshrl.u32 %v2145, 23
    %v2147 = vsub.s32 %v2146, 127
    %v2148 = vand.u32 2147483647, %v2034
    %v2149 = vand.u32 %v2148, 8388607
    %v2150 = vor.u32 %v2149, 8388608
    %v2151 = vsub.s32 0, %v2150
    %v2152 = vadd.s32 %v2147, 1
    %vm2153 = vcmp.gt.s32.totalorder %v2152, 0
    %v2154 = vsel %vm2153, %v2152, 0
    %v2155 = vshrl.u32 %v2154, 5
    %v2156 = vand.u32 %v2154, 31
    %v2157 = vsub.s32 32, %v2156
    %v2158 = vshrl.u32 683565275, %v2157
    %v2159 = vshll.u32 683565275, %v2156
    %v2160 = vshrl.u32 2475754826, %v2157
    %v2161 = vor.u32 %v2159, %v2160
    %v2162 = vshll.u32 2475754826, %v2156
    %v2163 = vshrl.u32 2131351028, %v2157
    %v2164 = vor.u32 %v2162, %v2163
    %v2165 = vshll.u32 2131351028, %v2156
    %v2166 = vshrl.u32 2102212464, %v2157
    %v2167 = vor.u32 %v2165, %v2166
    %v2168 = vshll.u32 2102212464, %v2156
    %v2169 = vshrl.u32 920167782, %v2157
    %v2170 = vor.u32 %v2168, %v2169
    %v2171 = vshll.u32 920167782, %v2156
    %v2172 = vshrl.u32 1326507024, %v2157
    %v2173 = vor.u32 %v2171, %v2172
    %vm2174 = vcmp.lt.s32.totalorder %v2155, 1
    %vm2175 = vcmp.lt.s32.totalorder %v2155, 2
    %vm2176 = vcmp.lt.s32.totalorder %v2155, 3
    %vm2177 = vcmp.lt.s32.totalorder %v2155, 4
    %v2178 = vsel %vm2174, %v2158, %v2161
    %v2179 = vsel %vm2177, %v2167, 2102212464
    %v2180 = vsel %vm2176, %v2164, %v2179
    %v2181 = vsel %vm2175, %v2178, %v2180
    %v2182 = vsel %vm2174, %v2161, %v2164
    %v2183 = vsel %vm2177, %v2170, 920167782
    %v2184 = vsel %vm2176, %v2167, %v2183
    %v2185 = vsel %vm2175, %v2182, %v2184
    %v2186 = vsel %vm2174, %v2164, %v2167
    %v2187 = vsel %vm2177, %v2173, 1326507024
    %v2188 = vsel %vm2176, %v2170, %v2187
    %v2189 = vsel %vm2175, %v2186, %v2188
    %v2190 = vshll.u32 %v2150, 8
    %v2191 = vmul.u32.u64.compose %v2190, %v2189
    %v2192 = vextract.low.u32 %v2191
    %v2193 = vextract.high.u32 %v2191
    %v2194 = vmul.u32.u64.compose %v2190, %v2185
    %v2195 = vextract.low.u32 %v2194
    %v2196 = vextract.high.u32 %v2194
    %v2197 = vmul.u32 %v2190, %v2181
    %v2198 = vadd.s32 %v2193, %v2195
    %vm2199 = vc.u32 %v2193, %v2195
    %v2200 = vadd.s32 %v2196, 1
    %v2201 = vsel %vm2199, %v2200, %v2196
    %v2202 = vadd.s32 %v2197, %v2201
    %v2203 = vadd.s32 %v2202, 536870912
    %v2204 = vshrl.u32 %v2203, 30
    %v2205 = vshll.u32 %v2204, 30
    %v2206 = vsub.s32 %v2202, %v2205
    %vm2207 = vcmp.lt.s32.totalorder %v2206, 0
    %v2208 = vsub.s32 0, %v2206
    %v2209 = vsel %vm2207, %v2208, %v2206
    %v2210 = vclz %v2209
    %v2211 = vsub.s32 %v2210, 2
    %vm2212 = vcmp.gt.s32.totalorder 0, %v2211
    %v2213 = vsel %vm2212, 0, %v2211
    %v2214 = vsub.s32 32, %v2213
    %v2215 = vshll.u32 %v2206, %v2213
    %v2216 = vshrl.u32 %v2198, %v2214
    %v2217 = vor.u32 %v2215, %v2216
    %v2218 = vsub.s32 4294967266, %v2213
    %v2219 = vadd.s32 %v2218, 127
    %v2220 = vshll.u32 %v2219, 23
    %v2221 = vor.u32 4788187, %v2220
    %v2222 = vand.u32 2147483647, %v2221
    %v2224 = vcvt.s32.f32 %v2217
    %v2225 = vmul.f32 %v2224, %v2222
    %v2226 = vxor.u32 %v2225, 2147483648
    %v2227 = vsel %vm2144, %v2226, %v2225
    %v2228 = vsub.s32 4, %v2204
    %v2229 = vsel %vm2144, %v2228, %v2204
    %v2230 = vsel %vm2143, %v2034, %v2227
    %v2231 = vsel %vm2143, 0, %v2229
    %v2232 = vcosq.f32.pop %v2230
    %v2233 = vsinq.f32.pop %v2230
    %vm2234 = vweird.f32 %v2034
    %v2235 = vadd.s32 %v2231, 3
    %v2236 = vand.u32 %v2235, 3
    %vm2237 = vcmp.lt.s32.totalorder %v2236, 2
    %vm2238 = vcmp.eq.s32.totalorder %v2236, 0
    %v2239 = vxor.u32 %v2233, 2147483648
    %v2240 = vsel %vm2238, %v2232, %v2239
    %vm2241 = vcmp.eq.s32.totalorder %v2236, 2
    %v2242 = vxor.u32 %v2232, 2147483648
    %v2243 = vsel %vm2241, %v2242, %v2233
    %v2244 = vsel %vm2237, %v2240, %v2243
    %v2245 = vsel %vm2234, nan, %v2244
    %v2246 = vand.u32 2147483647, %v2035
    %vm2247 = vcmp.le.f32.partialorder %v2246, 0.7853982
    %vm2248 = vcmp.lt.s32.totalorder %v2035, 0
    %v2249 = vand.u32 %v2035, 2139095040
    %v2250 = vshrl.u32 %v2249, 23
    %v2251 = vsub.s32 %v2250, 127
    %v2252 = vand.u32 2147483647, %v2035
    %v2253 = vand.u32 %v2252, 8388607
    %v2254 = vor.u32 %v2253, 8388608
    %v2255 = vsub.s32 0, %v2254
    %v2256 = vadd.s32 %v2251, 1
    %vm2257 = vcmp.gt.s32.totalorder %v2256, 0
    %v2258 = vsel %vm2257, %v2256, 0
    %v2259 = vshrl.u32 %v2258, 5
    %v2260 = vand.u32 %v2258, 31
    %v2261 = vsub.s32 32, %v2260
    %v2262 = vshrl.u32 683565275, %v2261
    %v2263 = vshll.u32 683565275, %v2260
    %v2264 = vshrl.u32 2475754826, %v2261
    %v2265 = vor.u32 %v2263, %v2264
    %v2266 = vshll.u32 2475754826, %v2260
    %v2267 = vshrl.u32 2131351028, %v2261
    %v2268 = vor.u32 %v2266, %v2267
    %v2269 = vshll.u32 2131351028, %v2260
    %v2270 = vshrl.u32 2102212464, %v2261
    %v2271 = vor.u32 %v2269, %v2270
    %v2272 = vshll.u32 2102212464, %v2260
    %v2273 = vshrl.u32 920167782, %v2261
    %v2274 = vor.u32 %v2272, %v2273
    %v2275 = vshll.u32 920167782, %v2260
    %v2276 = vshrl.u32 1326507024, %v2261
    %v2277 = vor.u32 %v2275, %v2276
    %vm2278 = vcmp.lt.s32.totalorder %v2259, 1
    %vm2279 = vcmp.lt.s32.totalorder %v2259, 2
    %vm2280 = vcmp.lt.s32.totalorder %v2259, 3
    %vm2281 = vcmp.lt.s32.totalorder %v2259, 4
    %v2282 = vsel %vm2278, %v2262, %v2265
    %v2283 = vsel %vm2281, %v2271, 2102212464
    %v2284 = vsel %vm2280, %v2268, %v2283
    %v2285 = vsel %vm2279, %v2282, %v2284
    %v2286 = vsel %vm2278, %v2265, %v2268
    %v2287 = vsel %vm2281, %v2274, 920167782
    %v2288 = vsel %vm2280, %v2271, %v2287
    %v2289 = vsel %vm2279, %v2286, %v2288
    %v2290 = vsel %vm2278, %v2268, %v2271
    %v2291 = vsel %vm2281, %v2277, 1326507024
    %v2292 = vsel %vm2280, %v2274, %v2291
    %v2293 = vsel %vm2279, %v2290, %v2292
    %v2294 = vshll.u32 %v2254, 8
    %v2295 = vmul.u32.u64.compose %v2294, %v2293
    %v2296 = vextract.low.u32 %v2295
    %v2297 = vextract.high.u32 %v2295
    %v2298 = vmul.u32.u64.compose %v2294, %v2289
    %v2299 = vextract.low.u32 %v2298
    %v2300 = vextract.high.u32 %v2298
    %v2301 = vmul.u32 %v2294, %v2285
    %v2302 = vadd.s32 %v2297, %v2299
    %vm2303 = vc.u32 %v2297, %v2299
    %v2304 = vadd.s32 %v2300, 1
    %v2305 = vsel %vm2303, %v2304, %v2300
    %v2306 = vadd.s32 %v2301, %v2305
    %v2307 = vadd.s32 %v2306, 536870912
    %v2308 = vshrl.u32 %v2307, 30
    %v2309 = vshll.u32 %v2308, 30
    %v2310 = vsub.s32 %v2306, %v2309
    %vm2311 = vcmp.lt.s32.totalorder %v2310, 0
    %v2312 = vsub.s32 0, %v2310
    %v2313 = vsel %vm2311, %v2312, %v2310
    %v2314 = vclz %v2313
    %v2315 = vsub.s32 %v2314, 2
    %vm2316 = vcmp.gt.s32.totalorder 0, %v2315
    %v2317 = vsel %vm2316, 0, %v2315
    %v2318 = vsub.s32 32, %v2317
    %v2319 = vshll.u32 %v2310, %v2317
    %v2320 = vshrl.u32 %v2302, %v2318
    %v2321 = vor.u32 %v2319, %v2320
    %v2322 = vsub.s32 4294967266, %v2317
    %v2323 = vadd.s32 %v2322, 127
    %v2324 = vshll.u32 %v2323, 23
    %v2325 = vor.u32 4788187, %v2324
    %v2326 = vand.u32 2147483647, %v2325
    %v2328 = vcvt.s32.f32 %v2321
    %v2329 = vmul.f32 %v2328, %v2326
    %v2330 = vxor.u32 %v2329, 2147483648
    %v2331 = vsel %vm2248, %v2330, %v2329
    %v2332 = vsub.s32 4, %v2308
    %v2333 = vsel %vm2248, %v2332, %v2308
    %v2334 = vsel %vm2247, %v2035, %v2331
    %v2335 = vsel %vm2247, 0, %v2333
    %v2336 = vcosq.f32.pop %v2334
    %v2337 = vsinq.f32.pop %v2334
    %vm2338 = vweird.f32 %v2035
    %v2339 = vadd.s32 %v2335, 3
    %v2340 = vand.u32 %v2339, 3
    %vm2341 = vcmp.lt.s32.totalorder %v2340, 2
    %vm2342 = vcmp.eq.s32.totalorder %v2340, 0
    %v2343 = vxor.u32 %v2337, 2147483648
    %v2344 = vsel %vm2342, %v2336, %v2343
    %vm2345 = vcmp.eq.s32.totalorder %v2340, 2
    %v2346 = vxor.u32 %v2336, 2147483648
    %v2347 = vsel %vm2345, %v2346, %v2337
    %v2348 = vsel %vm2341, %v2344, %v2347
    %v2349 = vsel %vm2338, nan, %v2348
    %v2350 = vand.u32 2147483647, %v2036
    %vm2351 = vcmp.le.f32.partialorder %v2350, 0.7853982
    %vm2352 = vcmp.lt.s32.totalorder %v2036, 0
    %v2353 = vand.u32 %v2036, 2139095040
    %v2354 = vshrl.u32 %v2353, 23
    %v2355 = vsub.s32 %v2354, 127
    %v2356 = vand.u32 2147483647, %v2036
    %v2357 = vand.u32 %v2356, 8388607
    %v2358 = vor.u32 %v2357, 8388608
    %v2359 = vsub.s32 0, %v2358
    %v2360 = vadd.s32 %v2355, 1
    %vm2361 = vcmp.gt.s32.totalorder %v2360, 0
    %v2362 = vsel %vm2361, %v2360, 0
    %v2363 = vshrl.u32 %v2362, 5
    %v2364 = vand.u32 %v2362, 31
    %v2365 = vsub.s32 32, %v2364
    %v2366 = vshrl.u32 683565275, %v2365
    %v2367 = vshll.u32 683565275, %v2364
    %v2368 = vshrl.u32 2475754826, %v2365
    %v2369 = vor.u32 %v2367, %v2368
    %v2370 = vshll.u32 2475754826, %v2364
    %v2371 = vshrl.u32 2131351028, %v2365
    %v2372 = vor.u32 %v2370, %v2371
    %v2373 = vshll.u32 2131351028, %v2364
    %v2374 = vshrl.u32 2102212464, %v2365
    %v2375 = vor.u32 %v2373, %v2374
    %v2376 = vshll.u32 2102212464, %v2364
    %v2377 = vshrl.u32 920167782, %v2365
    %v2378 = vor.u32 %v2376, %v2377
    %v2379 = vshll.u32 920167782, %v2364
    %v2380 = vshrl.u32 1326507024, %v2365
    %v2381 = vor.u32 %v2379, %v2380
    %vm2382 = vcmp.lt.s32.totalorder %v2363, 1
    %vm2383 = vcmp.lt.s32.totalorder %v2363, 2
    %vm2384 = vcmp.lt.s32.totalorder %v2363, 3
    %vm2385 = vcmp.lt.s32.totalorder %v2363, 4
    %v2386 = vsel %vm2382, %v2366, %v2369
    %v2387 = vsel %vm2385, %v2375, 2102212464
    %v2388 = vsel %vm2384, %v2372, %v2387
    %v2389 = vsel %vm2383, %v2386, %v2388
    %v2390 = vsel %vm2382, %v2369, %v2372
    %v2391 = vsel %vm2385, %v2378, 920167782
    %v2392 = vsel %vm2384, %v2375, %v2391
    %v2393 = vsel %vm2383, %v2390, %v2392
    %v2394 = vsel %vm2382, %v2372, %v2375
    %v2395 = vsel %vm2385, %v2381, 1326507024
    %v2396 = vsel %vm2384, %v2378, %v2395
    %v2397 = vsel %vm2383, %v2394, %v2396
    %v2398 = vshll.u32 %v2358, 8
    %v2399 = vmul.u32.u64.compose %v2398, %v2397
    %v2400 = vextract.low.u32 %v2399
    %v2401 = vextract.high.u32 %v2399
    %v2402 = vmul.u32.u64.compose %v2398, %v2393
    %v2403 = vextract.low.u32 %v2402
    %v2404 = vextract.high.u32 %v2402
    %v2405 = vmul.u32 %v2398, %v2389
    %v2406 = vadd.s32 %v2401, %v2403
    %vm2407 = vc.u32 %v2401, %v2403
    %v2408 = vadd.s32 %v2404, 1
    %v2409 = vsel %vm2407, %v2408, %v2404
    %v2410 = vadd.s32 %v2405, %v2409
    %v2411 = vadd.s32 %v2410, 536870912
    %v2412 = vshrl.u32 %v2411, 30
    %v2413 = vshll.u32 %v2412, 30
    %v2414 = vsub.s32 %v2410, %v2413
    %vm2415 = vcmp.lt.s32.totalorder %v2414, 0
    %v2416 = vsub.s32 0, %v2414
    %v2417 = vsel %vm2415, %v2416, %v2414
    %v2418 = vclz %v2417
    %v2419 = vsub.s32 %v2418, 2
    %vm2420 = vcmp.gt.s32.totalorder 0, %v2419
    %v2421 = vsel %vm2420, 0, %v2419
    %v2422 = vsub.s32 32, %v2421
    %v2423 = vshll.u32 %v2414, %v2421
    %v2424 = vshrl.u32 %v2406, %v2422
    %v2425 = vor.u32 %v2423, %v2424
    %v2426 = vsub.s32 4294967266, %v2421
    %v2427 = vadd.s32 %v2426, 127
    %v2428 = vshll.u32 %v2427, 23
    %v2429 = vor.u32 4788187, %v2428
    %v2430 = vand.u32 2147483647, %v2429
    %v2432 = vcvt.s32.f32 %v2425
    %v2433 = vmul.f32 %v2432, %v2430
    %v2434 = vxor.u32 %v2433, 2147483648
    %v2435 = vsel %vm2352, %v2434, %v2433
    %v2436 = vsub.s32 4, %v2412
    %v2437 = vsel %vm2352, %v2436, %v2412
    %v2438 = vsel %vm2351, %v2036, %v2435
    %v2439 = vsel %vm2351, 0, %v2437
    %v2440 = vcosq.f32.pop %v2438
    %v2441 = vsinq.f32.pop %v2438
    %vm2442 = vweird.f32 %v2036
    %v2443 = vadd.s32 %v2439, 3
    %v2444 = vand.u32 %v2443, 3
    %vm2445 = vcmp.lt.s32.totalorder %v2444, 2
    %vm2446 = vcmp.eq.s32.totalorder %v2444, 0
    %v2447 = vxor.u32 %v2441, 2147483648
    %v2448 = vsel %vm2446, %v2440, %v2447
    %vm2449 = vcmp.eq.s32.totalorder %v2444, 2
    %v2450 = vxor.u32 %v2440, 2147483648
    %v2451 = vsel %vm2449, %v2450, %v2441
    %v2452 = vsel %vm2445, %v2448, %v2451
    %v2453 = vsel %vm2442, nan, %v2452
    %v2454 = vand.u32 2147483647, %v2037
    %vm2455 = vcmp.le.f32.partialorder %v2454, 0.7853982
    %vm2456 = vcmp.lt.s32.totalorder %v2037, 0
    %v2457 = vand.u32 %v2037, 2139095040
    %v2458 = vshrl.u32 %v2457, 23
    %v2459 = vsub.s32 %v2458, 127
    %v2460 = vand.u32 2147483647, %v2037
    %v2461 = vand.u32 %v2460, 8388607
    %v2462 = vor.u32 %v2461, 8388608
    %v2463 = vsub.s32 0, %v2462
    %v2464 = vadd.s32 %v2459, 1
    %vm2465 = vcmp.gt.s32.totalorder %v2464, 0
    %v2466 = vsel %vm2465, %v2464, 0
    %v2467 = vshrl.u32 %v2466, 5
    %v2468 = vand.u32 %v2466, 31
    %v2469 = vsub.s32 32, %v2468
    %v2470 = vshrl.u32 683565275, %v2469
    %v2471 = vshll.u32 683565275, %v2468
    %v2472 = vshrl.u32 2475754826, %v2469
    %v2473 = vor.u32 %v2471, %v2472
    %v2474 = vshll.u32 2475754826, %v2468
    %v2475 = vshrl.u32 2131351028, %v2469
    %v2476 = vor.u32 %v2474, %v2475
    %v2477 = vshll.u32 2131351028, %v2468
    %v2478 = vshrl.u32 2102212464, %v2469
    %v2479 = vor.u32 %v2477, %v2478
    %v2480 = vshll.u32 2102212464, %v2468
    %v2481 = vshrl.u32 920167782, %v2469
    %v2482 = vor.u32 %v2480, %v2481
    %v2483 = vshll.u32 920167782, %v2468
    %v2484 = vshrl.u32 1326507024, %v2469
    %v2485 = vor.u32 %v2483, %v2484
    %vm2486 = vcmp.lt.s32.totalorder %v2467, 1
    %vm2487 = vcmp.lt.s32.totalorder %v2467, 2
    %vm2488 = vcmp.lt.s32.totalorder %v2467, 3
    %vm2489 = vcmp.lt.s32.totalorder %v2467, 4
    %v2490 = vsel %vm2486, %v2470, %v2473
    %v2491 = vsel %vm2489, %v2479, 2102212464
    %v2492 = vsel %vm2488, %v2476, %v2491
    %v2493 = vsel %vm2487, %v2490, %v2492
    %v2494 = vsel %vm2486, %v2473, %v2476
    %v2495 = vsel %vm2489, %v2482, 920167782
    %v2496 = vsel %vm2488, %v2479, %v2495
    %v2497 = vsel %vm2487, %v2494, %v2496
    %v2498 = vsel %vm2486, %v2476, %v2479
    %v2499 = vsel %vm2489, %v2485, 1326507024
    %v2500 = vsel %vm2488, %v2482, %v2499
    %v2501 = vsel %vm2487, %v2498, %v2500
    %v2502 = vshll.u32 %v2462, 8
    %v2503 = vmul.u32.u64.compose %v2502, %v2501
    %v2504 = vextract.low.u32 %v2503
    %v2505 = vextract.high.u32 %v2503
    %v2506 = vmul.u32.u64.compose %v2502, %v2497
    %v2507 = vextract.low.u32 %v2506
    %v2508 = vextract.high.u32 %v2506
    %v2509 = vmul.u32 %v2502, %v2493
    %v2510 = vadd.s32 %v2505, %v2507
    %vm2511 = vc.u32 %v2505, %v2507
    %v2512 = vadd.s32 %v2508, 1
    %v2513 = vsel %vm2511, %v2512, %v2508
    %v2514 = vadd.s32 %v2509, %v2513
    %v2515 = vadd.s32 %v2514, 536870912
    %v2516 = vshrl.u32 %v2515, 30
    %v2517 = vshll.u32 %v2516, 30
    %v2518 = vsub.s32 %v2514, %v2517
    %vm2519 = vcmp.lt.s32.totalorder %v2518, 0
    %v2520 = vsub.s32 0, %v2518
    %v2521 = vsel %vm2519, %v2520, %v2518
    %v2522 = vclz %v2521
    %v2523 = vsub.s32 %v2522, 2
    %vm2524 = vcmp.gt.s32.totalorder 0, %v2523
    %v2525 = vsel %vm2524, 0, %v2523
    %v2526 = vsub.s32 32, %v2525
    %v2527 = vshll.u32 %v2518, %v2525
    %v2528 = vshrl.u32 %v2510, %v2526
    %v2529 = vor.u32 %v2527, %v2528
    %v2530 = vsub.s32 4294967266, %v2525
    %v2531 = vadd.s32 %v2530, 127
    %v2532 = vshll.u32 %v2531, 23
    %v2533 = vor.u32 4788187, %v2532
    %v2534 = vand.u32 2147483647, %v2533
    %v2536 = vcvt.s32.f32 %v2529
    %v2537 = vmul.f32 %v2536, %v2534
    %v2538 = vxor.u32 %v2537, 2147483648
    %v2539 = vsel %vm2456, %v2538, %v2537
    %v2540 = vsub.s32 4, %v2516
    %v2541 = vsel %vm2456, %v2540, %v2516
    %v2542 = vsel %vm2455, %v2037, %v2539
    %v2543 = vsel %vm2455, 0, %v2541
    %v2544 = vcosq.f32.pop %v2542
    %v2545 = vsinq.f32.pop %v2542
    %vm2546 = vweird.f32 %v2037
    %v2547 = vadd.s32 %v2543, 3
    %v2548 = vand.u32 %v2547, 3
    %vm2549 = vcmp.lt.s32.totalorder %v2548, 2
    %vm2550 = vcmp.eq.s32.totalorder %v2548, 0
    %v2551 = vxor.u32 %v2545, 2147483648
    %v2552 = vsel %vm2550, %v2544, %v2551
    %vm2553 = vcmp.eq.s32.totalorder %v2548, 2
    %v2554 = vxor.u32 %v2544, 2147483648
    %v2555 = vsel %vm2553, %v2554, %v2545
    %v2556 = vsel %vm2549, %v2552, %v2555
    %v2557 = vsel %vm2546, nan, %v2556
    %v2558 = vld [vmem:[%s3] sm:$0x1f]
    %vm2559 = vcmp.ne.s32.totalorder %v2558, 0
    %v2565 = vcombine.low %v779, %v781
    %v2566 = vcombine.low %v1452, %v1454
    %v2568 = vunpack.c.l.s4 1966171168
    %v2569 = vunpack.c.0.s8 %v2568
    %v2570 = vlaneseq
    %v2571 = vshrl.u32 %v2570, 7
    %v2572 = vsub.s32 %v2569, %v2571
    %v2573 = vrot.slane %v2565, %v2572
    %v2575 = vunpack.c.l.s4 1966171168
    %v2576 = vunpack.c.0.s8 %v2575
    %v2577 = vlaneseq
    %v2578 = vshrl.u32 %v2577, 7
    %v2579 = vsub.s32 %v2576, %v2578
    %v2580 = vrot.slane %v2566, %v2579
    %v2582 = vunpack.c.l.s4 1966171168
    %v2583 = vunpack.c.0.s8 %v2582
    %v2584 = vlaneseq
    %v2585 = vshrl.u32 %v2584, 7
    %v2586 = vsub.s32 %v2583, %v2585
    %v2587 = vrot.slane %v2003, %v2586
    %v2588 = vcombine.low %v2573, %v2580
    %v2590 = vunpack.c.l.s4 1966171168
    %v2591 = vunpack.c.0.s8 %v2590
    %v2592 = vlaneseq
    %v2593 = vshrl.u32 %v2592, 7
    %v2594 = vsub.s32 %v2591, %v2593
    %v2595 = vrot.slane %v2588, %v2594
    %v2597 = vunpack.c.l.s4 1966171168
    %v2598 = vunpack.c.0.s8 %v2597
    %v2599 = vlaneseq
    %v2600 = vshrl.u32 %v2599, 7
    %v2601 = vsub.s32 %v2598, %v2600
    %v2602 = vrot.slane %v2587, %v2601
    %v2603 = vcombine.low %v2595, %v2602
    %v2610 = vcombine.low %v2141, %v2245
    %v2611 = vcombine.low %v2349, %v2453
    %v2613 = vunpack.c.l.s4 1966171168
    %v2614 = vunpack.c.0.s8 %v2613
    %v2615 = vlaneseq
    %v2616 = vshrl.u32 %v2615, 7
    %v2617 = vsub.s32 %v2614, %v2616
    %v2618 = vrot.slane %v2610, %v2617
    %v2620 = vunpack.c.l.s4 1966171168
    %v2621 = vunpack.c.0.s8 %v2620
    %v2622 = vlaneseq
    %v2623 = vshrl.u32 %v2622, 7
    %v2624 = vsub.s32 %v2621, %v2623
    %v2625 = vrot.slane %v2611, %v2624
    %v2627 = vunpack.c.l.s4 1966171168
    %v2628 = vunpack.c.0.s8 %v2627
    %v2629 = vlaneseq
    %v2630 = vshrl.u32 %v2629, 7
    %v2631 = vsub.s32 %v2628, %v2630
    %v2632 = vrot.slane %v2557, %v2631
    %v2633 = vcombine.low %v2618, %v2625
    %v2635 = vunpack.c.l.s4 1966171168
    %v2636 = vunpack.c.0.s8 %v2635
    %v2637 = vlaneseq
    %v2638 = vshrl.u32 %v2637, 7
    %v2639 = vsub.s32 %v2636, %v2638
    %v2640 = vrot.slane %v2633, %v2639
    %v2642 = vunpack.c.l.s4 1966171168
    %v2643 = vunpack.c.0.s8 %v2642
    %v2644 = vlaneseq
    %v2645 = vshrl.u32 %v2644, 7
    %v2646 = vsub.s32 %v2643, %v2645
    %v2647 = vrot.slane %v2632, %v2646
    %v2648 = vcombine.low %v2640, %v2647
    %v2650 = vsel %vm2559, %v2603, %v2648
    %v2651 = vlaneseq
    %vm2652 = vcmp.ge.s32.totalorder %v2651, 0
    %vm2653 = vcmp.lt.s32.totalorder %v2651, 621
    %vm2654 = vmand %vm2652, %vm2653
    %2655 = vst.msk [vmem:[#allocation7] sm:$0x1f] %vm2654, %v2650
    // Predicated region
    $region26: #{tpu_custom_call.1} parent=1 // pred_check
      _
    $region27: #{tpu_custom_call.1} parent=1 // pred_check_branch
      %2657 = sbr.rel (0) target = $region29
    $region28: #{tpu_custom_call.1} parent=1 // pred_region
      %s2659 = ssub.s32 80, 80
      %2660 = vsyncadd [#allocation4], %s2659
      %s2662 = sshll.u32 [#allocation7], 4
      %s2663 = int_to_ptr.vmem [resolvable:$true] %s2662
      %2665 = dma.vmem_to_hbm [thread:$0]  %s2663, 80, %s4, [#allocation4]
    $region29: #{tpu_custom_call.1} parent=1 // pred_fallthru
      _
    // Predicated region
    $region30: #{tpu_custom_call.1} parent=1 // pred_check
      _
    $region31: #{tpu_custom_call.1} parent=1 // pred_check_branch
      %2667 = sbr.rel (0) target = $region33
    $region32: #{tpu_custom_call.1} parent=1 // pred_region
      %2668 = dma.done [#allocation4], 80
    $region33: #{tpu_custom_call.1} parent=1 // pred_fallthru
      _
    %2669 = vsyncpa [#allocation3], 1
    %2670 = vsyncpa [#allocation6], 1
    %2671 = vsyncpa [#allocation4], 1

</llo_original>
